<compile_context>
chip_gen: v6e
topology: v6e:2x2x1
jax: 0.10.0
libtpu: 0.0.40
codegen_flags: <defaults>
</compile_context>

<pallas_src>
import functools

import numpy as np
import jax
import jax.numpy as jnp
from jax import lax
from jax.experimental import pallas as pl
from jax.experimental.pallas import tpu as pltpu


def _layernorm(x, g, b, eps=1e-5):
    mu = jnp.mean(x, axis=-1, keepdims=True)
    var = jnp.mean((x - mu) ** 2, axis=-1, keepdims=True)
    return (x - mu) * lax.rsqrt(var + eps) * g + b


def sakt_kernel(q_ref, qa_ref,
                wq_ref, bq_ref, wkv_ref, bkv_ref,
                wo_ref, bo_ref,
                g1_ref, beta1_ref,
                w1_ref, b1_ref, w2_ref, b2_ref,
                g2_ref, beta2_ref,
                wp_ref, bp_ref,
                o_ref,
                q_bf, k_bf, v_bf, head_bf, attn_f32,
                *, num_heads):
    Bt, S, E = q_ref.shape                 # block: Bt batch elems x seq x embed
    Dh = E // num_heads
    M = Bt * S
    scale = jnp.float32(1.0 / np.sqrt(Dh))

    # causal mask built in-kernel (iota + compare is trivial VPU work; saves an
    # (S,S) f32 HBM input + its double-buffered VMEM copies). Kept in f32 so
    # the -1e30 constant never touches bf16.
    row = lax.broadcasted_iota(jnp.int32, (S, S), 0)
    col = lax.broadcasted_iota(jnp.int32, (S, S), 1)
    neg = jnp.where(col > row, jnp.float32(-1e30), jnp.float32(0.0))

    xq = q_ref[...].reshape(M, E)          # bf16, fold batch into M
    xkv = qa_ref[...].reshape(M, E)        # bf16

    # --- fused in-projections (bf16 MXU, f32 accumulation); cast to bf16 ONCE
    #     into scratch slabs so per-head slices need no repacking ---
    Q = jnp.dot(xq, wq_ref[...], preferred_element_type=jnp.float32) + bq_ref[...]
    KV = jnp.dot(xkv, wkv_ref[...], preferred_element_type=jnp.float32) + bkv_ref[...]
    q_bf[...] = Q.astype(jnp.bfloat16)
    k_bf[...] = KV[:, :E].astype(jnp.bfloat16)
    v_bf[...] = KV[:, E:].astype(jnp.bfloat16)

    # --- attention: bounded in-kernel loop over batch elements in the block ---
    # TODO(synk): for large S with small Dh the softmax exp is EUP-bound; a
    # flash-style key-tile loop that skips fully-masked (future) tiles would
    # roughly halve exp + score-matmul work. Not implemented here.
    @pl.loop(0, Bt)
    def _(b):
        base = pl.multiple_of(b * S, S) if S % 8 == 0 else b * S
        Qb = q_bf[pl.ds(base, S), :]       # (S, E) bf16
        Kb = k_bf[pl.ds(base, S), :]
        Vb = v_bf[pl.ds(base, S), :]
        for h in range(num_heads):         # small static unroll
            qh = Qb[:, h * Dh:(h + 1) * Dh]
            kh = Kb[:, h * Dh:(h + 1) * Dh]
            vh = Vb[:, h * Dh:(h + 1) * Dh]
            s = lax.dot_general(qh, kh, (((1,), (1,)), ((), ())),
                                preferred_element_type=jnp.float32) * scale + neg
            m = jnp.max(s, axis=-1, keepdims=True)
            p = jnp.exp(s - m)
            p = p * pl.reciprocal(jnp.sum(p, axis=-1, keepdims=True), approx=True)
            head = jnp.dot(p.astype(jnp.bfloat16), vh,
                           preferred_element_type=jnp.float32)       # (S, Dh)
            head_bf[:, h * Dh:(h + 1) * Dh] = head.astype(jnp.bfloat16)
        # single K=E out-projection per batch element (uses MXU native depth),
        # written into the attention slab at sublane offset b*S.
        attn_f32[pl.ds(base, S), :] = jnp.dot(
            head_bf[...], wo_ref[...], preferred_element_type=jnp.float32)

    attn = attn_f32[...] + bo_ref[...]

    # residual + layernorm1 (f32)
    x1 = _layernorm(attn + xq.astype(jnp.float32), g1_ref[...], beta1_ref[...])

    # --- FFN (dropout is identity at inference) ---
    h1 = jnp.maximum(
        jnp.dot(x1.astype(jnp.bfloat16), w1_ref[...],
                preferred_element_type=jnp.float32) + b1_ref[...], 0.0)
    f = jnp.dot(h1.astype(jnp.bfloat16), w2_ref[...],
                preferred_element_type=jnp.float32) + b2_ref[...]

    # residual + layernorm2 (f32)
    x2 = _layernorm(f + x1, g2_ref[...], beta2_ref[...])

    # --- prediction head: ONE (1,E) x (E, Bt*S) dot (f32), lane-dense rows
    #     written straight into o_ref (no concatenate, no Bt M=1 matmuls) ---
    pred = lax.dot_general(wp_ref[...], x2, (((1,), (1,)), ((), ())),
                           preferred_element_type=jnp.float32)        # (1, M)
    bp = bp_ref[0, 0]
    for b in range(Bt):                    # static: Bt is a compile-time block dim
        o_ref[pl.ds(b, 1), :] = (pred[:, b * S:(b + 1) * S] + bp).astype(o_ref.dtype)


def _kernel_vmem_footprint(bt, S, E):
    """Rough per-grid-step VMEM bytes for a (bt, S, E) block."""
    m = bt * S
    bf2, f4 = 2, 4
    inputs = 2 * 2 * m * E * bf2                 # q, qa blocks, double-buffered bf16
    outputs = 2 * bt * S * f4                    # (Bt, S) f32 out block, double-buffered
    scratch = 3 * m * E * bf2 + S * E * bf2 + m * E * f4   # q/k/v bf16, head bf16, attn f32
    # f32 transients around the matmuls / layernorms (Q|KV right after the
    # in-projection, x1/h1/f/x2 around the FFN) + per-head (S,S) score tiles.
    transients = 5 * m * E * f4 + 3 * S * S * f4
    consts = 12 * E * E * bf2 + 24 * E * f4      # single-buffered weights + biases
    return inputs + outputs + scratch + transients + consts


def _pick_block_b(B, S, E, vmem_limit_bytes):
    """Largest legal batch block that fits the VMEM budget.

    Legal means the (Bt, S) output block is valid: Bt % 8 == 0 or Bt == B.
    Prefers Bt < B (>= 2 grid steps) so the parallel batch axis can be split
    across the two TensorCores on v7x.
    """
    budget = vmem_limit_bytes // 2               # headroom for padding / spills
    cands = [bt for bt in range(B, 0, -1)
             if B % bt == 0 and (bt % 8 == 0 or bt == B)]
    multi = [bt for bt in cands if bt < B]
    order = (multi + [B]) if multi else cands
    for bt in order:
        if _kernel_vmem_footprint(bt, S, E) <= budget:
            return bt
    return cands[-1]    # smallest legal block; may spill for very large S*E


def sakt_forward(q_ids, qa_ids, params, num_heads, block_b=None,
                 vmem_limit_bytes=48 * 1024 * 1024):
    # --- glue: embedding lookups + positional add (gathers stay in JAX) ---
    qa_e = params['qa_embedding'][qa_ids]                       # (B, S, E)
    S = qa_ids.shape[1]
    qa_e = qa_e + params['pos_embedding'][jnp.arange(S)][None]
    q_e = params['q_embedding'][q_ids]                          # (B, S, E)
    B, S, E = q_e.shape
    assert E % num_heads == 0

    Bt = _pick_block_b(B, S, E, vmem_limit_bytes) if block_b is None else block_b
    assert B % Bt == 0 and (Bt % 8 == 0 or Bt == B)

    # split MultiheadAttention packed in-projection
    w_in, b_in = params['in_proj_weight'], params['in_proj_bias']
    wq, wk, wv = w_in[:E], w_in[E:2 * E], w_in[2 * E:]
    bq, bk, bv = b_in[:E], b_in[E:2 * E], b_in[2 * E:]

    def t16(w):  # (out, in) -> (in, out), bf16 for the MXU
        return jnp.asarray(w.T, jnp.bfloat16)

    def r32(b):  # (N,) -> (1, N) f32
        return jnp.asarray(b, jnp.float32).reshape(1, -1)

    consts = [
        t16(wq), r32(bq),
        jnp.concatenate([t16(wk), t16(wv)], axis=1),            # (E, 2E) fused K|V
        r32(jnp.concatenate([bk, bv])),                          # (1, 2E)
        t16(params['out_proj_weight']), r32(params['out_proj_bias']),
        r32(params['ln1_gamma']), r32(params['ln1_beta']),
        t16(params['ffn_w1']), r32(params['ffn_b1']),
        t16(params['ffn_w2']), r32(params['ffn_b2']),
        r32(params['ln2_gamma']), r32(params['ln2_beta']),
        r32(params['pred_w'].reshape(-1)),                       # (1, E)
        jnp.asarray(params['pred_b'], jnp.float32).reshape(1, 1),
    ]

    def const_spec(a):
        nd = a.ndim
        # constants never change across grid steps -> single-buffer them
        return pl.BlockSpec(a.shape, lambda b, _nd=nd: (0,) * _nd,
                            pipeline_mode=pl.Buffered(1))

    in_specs = [
        pl.BlockSpec((Bt, S, E), lambda b: (b, 0, 0)),
        pl.BlockSpec((Bt, S, E), lambda b: (b, 0, 0)),
    ] + [const_spec(c) for c in consts]

    out = pl.pallas_call(
        functools.partial(sakt_kernel, num_heads=num_heads),
        out_shape=jax.ShapeDtypeStruct((B, S), jnp.float32),
        grid=(B // Bt,),
        in_specs=in_specs,
        out_specs=pl.BlockSpec((Bt, S), lambda b: (b, 0)),       # lane-dense output
        scratch_shapes=[
            pltpu.VMEM((Bt * S, E), jnp.bfloat16),               # Q  (bf16 slab)
            pltpu.VMEM((Bt * S, E), jnp.bfloat16),               # K
            pltpu.VMEM((Bt * S, E), jnp.bfloat16),               # V
            pltpu.VMEM((S, E), jnp.bfloat16),                    # per-batch head concat
            pltpu.VMEM((Bt * S, E), jnp.float32),                # attention output slab
        ],
        compiler_params=pltpu.CompilerParams(
            dimension_semantics=("parallel",),                   # dual-TC on v7x
            vmem_limit_bytes=vmem_limit_bytes,                   # <= 48 MiB: fits v7x
        ),
    )(q_e.astype(jnp.bfloat16), qa_e.astype(jnp.bfloat16), *consts)
    return out, None   # matches (x.squeeze(-1), None)


def init_params(key, n_skill, embed_dim, max_len):
    ks = jax.random.split(key, 13)

    def nrm(k, shape, scale=0.05):
        return scale * jax.random.normal(k, shape, jnp.float32)

    params = {
        'q_embedding': nrm(ks[0], (n_skill + 1, embed_dim)),
        'qa_embedding': nrm(ks[1], (2 * n_skill + 2, embed_dim)),
        'pos_embedding': nrm(ks[2], (max_len, embed_dim)),
        'in_proj_weight': nrm(ks[3], (3 * embed_dim, embed_dim)),
        'in_proj_bias': nrm(ks[4], (3 * embed_dim,)),
        'out_proj_weight': nrm(ks[5], (embed_dim, embed_dim)),
        'out_proj_bias': nrm(ks[6], (embed_dim,)),
        'ln1_gamma': jnp.ones((embed_dim,), jnp.float32),
        'ln1_beta': jnp.zeros((embed_dim,), jnp.float32),
        'ffn_w1': nrm(ks[7], (embed_dim, embed_dim)),
        'ffn_b1': nrm(ks[8], (embed_dim,)),
        'ffn_w2': nrm(ks[9], (embed_dim, embed_dim)),
        'ffn_b2': nrm(ks[10], (embed_dim,)),
        'ln2_gamma': jnp.ones((embed_dim,), jnp.float32),
        'ln2_beta': jnp.zeros((embed_dim,), jnp.float32),
        'pred_w': nrm(ks[11], (1, embed_dim)),
        'pred_b': nrm(ks[12], (1,)),
    }
    # emulate nn.Embedding padding_idx rows (zeroed)
    params['q_embedding'] = params['q_embedding'].at[n_skill].set(0.0)
    params['qa_embedding'] = params['qa_embedding'].at[2 * n_skill + 1].set(0.0)
    return params


def sakt_reference(q_ids, qa_ids, params, num_heads):
    """Pure-JAX f32 reference mirroring the PyTorch forward (eval mode)."""
    E = params['q_embedding'].shape[1]
    Dh = E // num_heads
    B, S = q_ids.shape
    qa_e = params['qa_embedding'][qa_ids] + params['pos_embedding'][jnp.arange(S)][None]
    q_e = params['q_embedding'][q_ids]
    w_in, b_in = params['in_proj_weight'], params['in_proj_bias']
    wq, wk, wv = w_in[:E], w_in[E:2 * E], w_in[2 * E:]
    bq, bk, bv = b_in[:E], b_in[E:2 * E], b_in[2 * E:]
    Q = q_e @ wq.T + bq
    K = qa_e @ wk.T + bk
    V = qa_e @ wv.T + bv
    Qh = Q.reshape(B, S, num_heads, Dh).transpose(0, 2, 1, 3)
    Kh = K.reshape(B, S, num_heads, Dh).transpose(0, 2, 1, 3)
    Vh = V.reshape(B, S, num_heads, Dh).transpose(0, 2, 1, 3)
    s = jnp.einsum('bhqd,bhkd->bhqk', Qh * (1.0 / np.sqrt(Dh)), Kh)
    mask = np.triu(np.ones((S, S)), k=1).astype(bool)
    s = jnp.where(mask[None, None], -1e30, s)
    p = jax.nn.softmax(s, axis=-1)
    attn = jnp.einsum('bhqk,bhkd->bhqd', p, Vh).transpose(0, 2, 1, 3).reshape(B, S, E)
    attn = attn @ params['out_proj_weight'].T + params['out_proj_bias']

    def ln(x, g, b):
        mu = x.mean(-1, keepdims=True)
        var = ((x - mu) ** 2).mean(-1, keepdims=True)
        return (x - mu) / jnp.sqrt(var + 1e-5) * g + b

    x1 = ln(attn + q_e, params['ln1_gamma'], params['ln1_beta'])
    h1 = jax.nn.relu(x1 @ params['ffn_w1'].T + params['ffn_b1'])
    f = h1 @ params['ffn_w2'].T + params['ffn_b2']
    x2 = ln(f + x1, params['ln2_gamma'], params['ln2_beta'])
    out = x2 @ params['pred_w'].T + params['pred_b']
    return out[..., 0]


if __name__ == "__main__":
    n_skill, embed_dim, num_heads, max_len = 10, 32, 4, 64
    key = jax.random.PRNGKey(0)
    kp, kq, kqa = jax.random.split(key, 3)
    params = init_params(kp, n_skill, embed_dim, max_len)

    # Case 1: tiny batch (single grid step, Bt == B)
    B, S = 2, 8
    q_ids = jax.random.randint(kq, (B, S), 0, n_skill)
    qa_ids = jax.random.randint(kqa, (B, S), 0, 2 * n_skill)
    out, _ = sakt_forward(q_ids, qa_ids, params, num_heads)
    out = jax.block_until_ready(out)
    assert out.shape == (B, S)
    ref = sakt_reference(q_ids, qa_ids, params, num_heads)
    # Tolerance relaxed vs. pure-f32 because MXU matmuls run in bf16 (f32
    # accumulation); softmax / layernorm statistics stay in f32.
    np.testing.assert_allclose(np.asarray(out), np.asarray(ref), rtol=2e-2, atol=2e-2)

    # Case 2: larger batch -> VMEM-aware Bt picker splits into >= 2 grid steps
    B2 = 16
    kq2, kqa2 = jax.random.split(jax.random.PRNGKey(1))
    q_ids2 = jax.random.randint(kq2, (B2, S), 0, n_skill)
    qa_ids2 = jax.random.randint(kqa2, (B2, S), 0, 2 * n_skill)
    out2, _ = sakt_forward(q_ids2, qa_ids2, params, num_heads)
    out2 = jax.block_until_ready(out2)
    assert out2.shape == (B2, S)
    ref2 = sakt_reference(q_ids2, qa_ids2, params, num_heads)
    np.testing.assert_allclose(np.asarray(out2), np.asarray(ref2), rtol=2e-2, atol=2e-2)

    # TODO(synk): dropout layers are identity here (inference semantics); training-mode
    # stochastic dropout is not implemented.
    print("KERNEL_OK")
</pallas_src>

<mosaic_0001>
module attributes {stable_mosaic.version = 11 : i64} {
  func.func @sakt_kernel(%arg0: i32, %arg1: memref<2x8x32xbf16, #tpu.memory_space<vmem>>, %arg2: memref<2x8x32xbf16, #tpu.memory_space<vmem>>, %arg3: memref<32x32xbf16, #tpu.memory_space<vmem>>, %arg4: memref<1x32xf32, #tpu.memory_space<vmem>>, %arg5: memref<32x64xbf16, #tpu.memory_space<vmem>>, %arg6: memref<1x64xf32, #tpu.memory_space<vmem>>, %arg7: memref<32x32xbf16, #tpu.memory_space<vmem>>, %arg8: memref<1x32xf32, #tpu.memory_space<vmem>>, %arg9: memref<1x32xf32, #tpu.memory_space<vmem>>, %arg10: memref<1x32xf32, #tpu.memory_space<vmem>>, %arg11: memref<32x32xbf16, #tpu.memory_space<vmem>>, %arg12: memref<1x32xf32, #tpu.memory_space<vmem>>, %arg13: memref<32x32xbf16, #tpu.memory_space<vmem>>, %arg14: memref<1x32xf32, #tpu.memory_space<vmem>>, %arg15: memref<1x32xf32, #tpu.memory_space<vmem>>, %arg16: memref<1x32xf32, #tpu.memory_space<vmem>>, %arg17: memref<1x32xf32, #tpu.memory_space<vmem>>, %arg18: memref<1x1xf32, #tpu.memory_space<vmem>>, %arg19: memref<2x8xf32, #tpu.memory_space<vmem>>, %arg20: memref<16x32xbf16, #tpu.memory_space<vmem>>, %arg21: memref<16x32xbf16, #tpu.memory_space<vmem>>, %arg22: memref<16x32xbf16, #tpu.memory_space<vmem>>, %arg23: memref<8x32xbf16, #tpu.memory_space<vmem>>, %arg24: memref<16x32xf32, #tpu.memory_space<vmem>>) attributes {dimension_semantics = [#tpu.dimension_semantics<parallel>], iteration_bounds = array<i64: 1>, scalar_prefetch = 0 : i64, scratch_operands = 5 : i64, tpu.core_type = #tpu.core_type<tc>, window_params = [{transform_indices = @transform_0, window_bounds = array<i64: 2, 8, 32>}, {transform_indices = @transform_1, window_bounds = array<i64: 2, 8, 32>}, {pipeline_mode = #tpu.pipeline_mode<synchronous>, transform_indices = @transform_2, window_bounds = array<i64: 32, 32>}, {pipeline_mode = #tpu.pipeline_mode<synchronous>, transform_indices = @transform_3, window_bounds = array<i64: 1, 32>}, {pipeline_mode = #tpu.pipeline_mode<synchronous>, transform_indices = @transform_4, window_bounds = array<i64: 32, 64>}, {pipeline_mode = #tpu.pipeline_mode<synchronous>, transform_indices = @transform_5, window_bounds = array<i64: 1, 64>}, {pipeline_mode = #tpu.pipeline_mode<synchronous>, transform_indices = @transform_6, window_bounds = array<i64: 32, 32>}, {pipeline_mode = #tpu.pipeline_mode<synchronous>, transform_indices = @transform_7, window_bounds = array<i64: 1, 32>}, {pipeline_mode = #tpu.pipeline_mode<synchronous>, transform_indices = @transform_8, window_bounds = array<i64: 1, 32>}, {pipeline_mode = #tpu.pipeline_mode<synchronous>, transform_indices = @transform_9, window_bounds = array<i64: 1, 32>}, {pipeline_mode = #tpu.pipeline_mode<synchronous>, transform_indices = @transform_10, window_bounds = array<i64: 32, 32>}, {pipeline_mode = #tpu.pipeline_mode<synchronous>, transform_indices = @transform_11, window_bounds = array<i64: 1, 32>}, {pipeline_mode = #tpu.pipeline_mode<synchronous>, transform_indices = @transform_12, window_bounds = array<i64: 32, 32>}, {pipeline_mode = #tpu.pipeline_mode<synchronous>, transform_indices = @transform_13, window_bounds = array<i64: 1, 32>}, {pipeline_mode = #tpu.pipeline_mode<synchronous>, transform_indices = @transform_14, window_bounds = array<i64: 1, 32>}, {pipeline_mode = #tpu.pipeline_mode<synchronous>, transform_indices = @transform_15, window_bounds = array<i64: 1, 32>}, {pipeline_mode = #tpu.pipeline_mode<synchronous>, transform_indices = @transform_16, window_bounds = array<i64: 1, 32>}, {pipeline_mode = #tpu.pipeline_mode<synchronous>, transform_indices = @transform_17, window_bounds = array<i64: 1, 1>}, {transform_indices = @transform_18, window_bounds = array<i64: 2, 8>}]} {
    %0 = tpu.iota {dimensions = array<i32: 0>} : vector<8x8xi32>
    %1 = tpu.iota {dimensions = array<i32: 1>} : vector<8x8xi32>
    %2 = arith.cmpi sgt, %1, %0 : vector<8x8xi32>
    %cst = arith.constant -1.000000e+30 : f32
    %cst_0 = arith.constant 0.000000e+00 : f32
    %3 = vector.broadcast %cst : f32 to vector<8x8xf32>
    %4 = vector.broadcast %cst_0 : f32 to vector<8x8xf32>
    %5 = arith.select %2, %3, %4 : vector<8x8xi1>, vector<8x8xf32>
    %c0 = arith.constant 0 : index
    %c0_1 = arith.constant 0 : index
    %c0_2 = arith.constant 0 : index
    %6 = vector.load %arg1[%c0, %c0_1, %c0_2] : memref<2x8x32xbf16, #tpu.memory_space<vmem>>, vector<2x8x32xbf16>
    %7 = vector.shape_cast %6 : vector<2x8x32xbf16> to vector<16x32xbf16>
    %c0_3 = arith.constant 0 : index
    %c0_4 = arith.constant 0 : index
    %c0_5 = arith.constant 0 : index
    %8 = vector.load %arg2[%c0_3, %c0_4, %c0_5] : memref<2x8x32xbf16, #tpu.memory_space<vmem>>, vector<2x8x32xbf16>
    %9 = vector.shape_cast %8 : vector<2x8x32xbf16> to vector<16x32xbf16>
    %c0_6 = arith.constant 0 : index
    %c0_7 = arith.constant 0 : index
    %10 = vector.load %arg3[%c0_6, %c0_7] : memref<32x32xbf16, #tpu.memory_space<vmem>>, vector<32x32xbf16>
    %cst_8 = arith.constant dense<0.000000e+00> : vector<16x32xf32>
    %11 = tpu.matmul %7, %10, %cst_8 {dimension_numbers = #tpu.dot_dimension_numbers<[1], [0], [0], [1], [0, 0, 1, 1], [], []>} : vector<16x32xbf16>, vector<32x32xbf16>, vector<16x32xf32> -> vector<16x32xf32>
    %c0_9 = arith.constant 0 : index
    %c0_10 = arith.constant 0 : index
    %12 = vector.load %arg4[%c0_9, %c0_10] : memref<1x32xf32, #tpu.memory_space<vmem>>, vector<1x32xf32>
    %13 = vector.broadcast %12 : vector<1x32xf32> to vector<16x32xf32>
    %14 = arith.addf %11, %13 : vector<16x32xf32>
    %c0_11 = arith.constant 0 : index
    %c0_12 = arith.constant 0 : index
    %15 = vector.load %arg5[%c0_11, %c0_12] : memref<32x64xbf16, #tpu.memory_space<vmem>>, vector<32x64xbf16>
    %cst_13 = arith.constant dense<0.000000e+00> : vector<16x64xf32>
    %16 = tpu.matmul %9, %15, %cst_13 {dimension_numbers = #tpu.dot_dimension_numbers<[1], [0], [0], [1], [0, 0, 1, 1], [], []>} : vector<16x32xbf16>, vector<32x64xbf16>, vector<16x64xf32> -> vector<16x64xf32>
    %c0_14 = arith.constant 0 : index
    %c0_15 = arith.constant 0 : index
    %17 = vector.load %arg6[%c0_14, %c0_15] : memref<1x64xf32, #tpu.memory_space<vmem>>, vector<1x64xf32>
    %18 = vector.broadcast %17 : vector<1x64xf32> to vector<16x64xf32>
    %19 = arith.addf %16, %18 : vector<16x64xf32>
    %20 = arith.truncf %14 : vector<16x32xf32> to vector<16x32xbf16>
    %c0_16 = arith.constant 0 : index
    %c0_17 = arith.constant 0 : index
    %21 = vector.load %arg20[%c0_16, %c0_17] : memref<16x32xbf16, #tpu.memory_space<vmem>>, vector<16x32xbf16>
    tpu.vector_store %arg20[%c0_16, %c0_17], %20 {strides = array<i32>} : memref<16x32xbf16, #tpu.memory_space<vmem>>, vector<16x32xbf16>,
    %22 = vector.extract_strided_slice %19 {offsets = [0, 0], sizes = [16, 32], strides = [1, 1]} : vector<16x64xf32> to vector<16x32xf32>
    %23 = arith.truncf %22 : vector<16x32xf32> to vector<16x32xbf16>
    %c0_18 = arith.constant 0 : index
    %c0_19 = arith.constant 0 : index
    %24 = vector.load %arg21[%c0_18, %c0_19] : memref<16x32xbf16, #tpu.memory_space<vmem>>, vector<16x32xbf16>
    tpu.vector_store %arg21[%c0_18, %c0_19], %23 {strides = array<i32>} : memref<16x32xbf16, #tpu.memory_space<vmem>>, vector<16x32xbf16>,
    %25 = vector.extract_strided_slice %19 {offsets = [0, 32], sizes = [16, 32], strides = [1, 1]} : vector<16x64xf32> to vector<16x32xf32>
    %26 = arith.truncf %25 : vector<16x32xf32> to vector<16x32xbf16>
    %c0_20 = arith.constant 0 : index
    %c0_21 = arith.constant 0 : index
    %27 = vector.load %arg22[%c0_20, %c0_21] : memref<16x32xbf16, #tpu.memory_space<vmem>>, vector<16x32xbf16>
    tpu.vector_store %arg22[%c0_20, %c0_21], %26 {strides = array<i32>} : memref<16x32xbf16, #tpu.memory_space<vmem>>, vector<16x32xbf16>,
    %cst_22 = arith.constant 0.353553385 : f32
    %c0_i32 = arith.constant 0 : i32
    %c2_i32 = arith.constant 2 : i32
    %28 = arith.addi %c0_i32, %c2_i32 : i32
    %c1_i32 = arith.constant 1 : i32
    scf.for %arg25 = %c0_i32 to %28 step %c1_i32  : i32 {
      %c1_i32_65 = arith.constant 1 : i32
      %110 = arith.muli %arg25, %c1_i32_65 : i32
      %c0_i32_66 = arith.constant 0 : i32
      %111 = arith.addi %c0_i32_66, %110 : i32
      %c8_i32 = arith.constant 8 : i32
      %112 = arith.muli %111, %c8_i32 : i32
      %113 = tpu.assume_multiple %112, 8 : i32
      %114 = arith.index_cast %113 : i32 to index
      %c0_67 = arith.constant 0 : index
      %115 = vector.load %arg20[%114, %c0_67] : memref<16x32xbf16, #tpu.memory_space<vmem>>, vector<8x32xbf16>
      %116 = arith.index_cast %113 : i32 to index
      %c0_68 = arith.constant 0 : index
      %117 = vector.load %arg21[%116, %c0_68] : memref<16x32xbf16, #tpu.memory_space<vmem>>, vector<8x32xbf16>
      %118 = arith.index_cast %113 : i32 to index
      %c0_69 = arith.constant 0 : index
      %119 = vector.load %arg22[%118, %c0_69] : memref<16x32xbf16, #tpu.memory_space<vmem>>, vector<8x32xbf16>
      %120 = vector.extract_strided_slice %115 {offsets = [0, 0], sizes = [8, 8], strides = [1, 1]} : vector<8x32xbf16> to vector<8x8xbf16>
      %121 = vector.extract_strided_slice %117 {offsets = [0, 0], sizes = [8, 8], strides = [1, 1]} : vector<8x32xbf16> to vector<8x8xbf16>
      %122 = vector.extract_strided_slice %119 {offsets = [0, 0], sizes = [8, 8], strides = [1, 1]} : vector<8x32xbf16> to vector<8x8xbf16>
      %cst_70 = arith.constant dense<0.000000e+00> : vector<8x8xf32>
      %123 = tpu.matmul %120, %121, %cst_70 {dimension_numbers = #tpu.dot_dimension_numbers<[1], [1], [0], [0], [0, 0, 1, 0], [], []>} : vector<8x8xbf16>, vector<8x8xbf16>, vector<8x8xf32> -> vector<8x8xf32>
      %124 = vector.broadcast %cst_22 : f32 to vector<8x8xf32>
      %125 = arith.mulf %123, %124 : vector<8x8xf32>
      %126 = arith.addf %125, %5 : vector<8x8xf32>
      %cst_71 = arith.constant dense<0xFF800000> : vector<8xf32>
      %127 = vector.multi_reduction <maximumf>, %126, %cst_71 [1] : vector<8x8xf32> to vector<8xf32>
      %128 = vector.shape_cast %127 : vector<8xf32> to vector<8x1xf32>
      %129 = vector.broadcast %128 : vector<8x1xf32> to vector<8x8xf32>
      %130 = arith.subf %126, %129 : vector<8x8xf32>
      %131 = math.exp %130 : vector<8x8xf32>
      %cst_72 = arith.constant dense<0.000000e+00> : vector<8xf32>
      %132 = vector.multi_reduction <add>, %131, %cst_72 [1] : vector<8x8xf32> to vector<8xf32>
      %133 = vector.shape_cast %132 : vector<8xf32> to vector<8x1xf32>
      %134 = tpu.reciprocal %133 {approx = true} : vector<8x1xf32> -> vector<8x1xf32>
      %135 = vector.broadcast %134 : vector<8x1xf32> to vector<8x8xf32>
      %136 = arith.mulf %131, %135 : vector<8x8xf32>
      %137 = arith.truncf %136 : vector<8x8xf32> to vector<8x8xbf16>
      %cst_73 = arith.constant dense<0.000000e+00> : vector<8x8xf32>
      %138 = tpu.matmul %137, %122, %cst_73 {dimension_numbers = #tpu.dot_dimension_numbers<[1], [0], [0], [1], [0, 0, 1, 1], [], []>} : vector<8x8xbf16>, vector<8x8xbf16>, vector<8x8xf32> -> vector<8x8xf32>
      %139 = arith.truncf %138 : vector<8x8xf32> to vector<8x8xbf16>
      %c0_74 = arith.constant 0 : index
      %c0_75 = arith.constant 0 : index
      %140 = vector.load %arg23[%c0_74, %c0_75] : memref<8x32xbf16, #tpu.memory_space<vmem>>, vector<8x8xbf16>
      tpu.vector_store %arg23[%c0_74, %c0_75], %139 {strides = array<i32>} : memref<8x32xbf16, #tpu.memory_space<vmem>>, vector<8x8xbf16>,
      %141 = vector.extract_strided_slice %115 {offsets = [0, 8], sizes = [8, 8], strides = [1, 1]} : vector<8x32xbf16> to vector<8x8xbf16>
      %142 = vector.extract_strided_slice %117 {offsets = [0, 8], sizes = [8, 8], strides = [1, 1]} : vector<8x32xbf16> to vector<8x8xbf16>
      %143 = vector.extract_strided_slice %119 {offsets = [0, 8], sizes = [8, 8], strides = [1, 1]} : vector<8x32xbf16> to vector<8x8xbf16>
      %cst_76 = arith.constant dense<0.000000e+00> : vector<8x8xf32>
      %144 = tpu.matmul %141, %142, %cst_76 {dimension_numbers = #tpu.dot_dimension_numbers<[1], [1], [0], [0], [0, 0, 1, 0], [], []>} : vector<8x8xbf16>, vector<8x8xbf16>, vector<8x8xf32> -> vector<8x8xf32>
      %145 = vector.broadcast %cst_22 : f32 to vector<8x8xf32>
      %146 = arith.mulf %144, %145 : vector<8x8xf32>
      %147 = arith.addf %146, %5 : vector<8x8xf32>
      %cst_77 = arith.constant dense<0xFF800000> : vector<8xf32>
      %148 = vector.multi_reduction <maximumf>, %147, %cst_77 [1] : vector<8x8xf32> to vector<8xf32>
      %149 = vector.shape_cast %148 : vector<8xf32> to vector<8x1xf32>
      %150 = vector.broadcast %149 : vector<8x1xf32> to vector<8x8xf32>
      %151 = arith.subf %147, %150 : vector<8x8xf32>
      %152 = math.exp %151 : vector<8x8xf32>
      %cst_78 = arith.constant dense<0.000000e+00> : vector<8xf32>
      %153 = vector.multi_reduction <add>, %152, %cst_78 [1] : vector<8x8xf32> to vector<8xf32>
      %154 = vector.shape_cast %153 : vector<8xf32> to vector<8x1xf32>
      %155 = tpu.reciprocal %154 {approx = true} : vector<8x1xf32> -> vector<8x1xf32>
      %156 = vector.broadcast %155 : vector<8x1xf32> to vector<8x8xf32>
      %157 = arith.mulf %152, %156 : vector<8x8xf32>
      %158 = arith.truncf %157 : vector<8x8xf32> to vector<8x8xbf16>
      %cst_79 = arith.constant dense<0.000000e+00> : vector<8x8xf32>
      %159 = tpu.matmul %158, %143, %cst_79 {dimension_numbers = #tpu.dot_dimension_numbers<[1], [0], [0], [1], [0, 0, 1, 1], [], []>} : vector<8x8xbf16>, vector<8x8xbf16>, vector<8x8xf32> -> vector<8x8xf32>
      %160 = arith.truncf %159 : vector<8x8xf32> to vector<8x8xbf16>
      %c0_80 = arith.constant 0 : index
      %c8 = arith.constant 8 : index
      %161 = vector.load %arg23[%c0_80, %c8] : memref<8x32xbf16, #tpu.memory_space<vmem>>, vector<8x8xbf16>
      tpu.vector_store %arg23[%c0_80, %c8], %160 {strides = array<i32>} : memref<8x32xbf16, #tpu.memory_space<vmem>>, vector<8x8xbf16>,
      %162 = vector.extract_strided_slice %115 {offsets = [0, 16], sizes = [8, 8], strides = [1, 1]} : vector<8x32xbf16> to vector<8x8xbf16>
      %163 = vector.extract_strided_slice %117 {offsets = [0, 16], sizes = [8, 8], strides = [1, 1]} : vector<8x32xbf16> to vector<8x8xbf16>
      %164 = vector.extract_strided_slice %119 {offsets = [0, 16], sizes = [8, 8], strides = [1, 1]} : vector<8x32xbf16> to vector<8x8xbf16>
      %cst_81 = arith.constant dense<0.000000e+00> : vector<8x8xf32>
      %165 = tpu.matmul %162, %163, %cst_81 {dimension_numbers = #tpu.dot_dimension_numbers<[1], [1], [0], [0], [0, 0, 1, 0], [], []>} : vector<8x8xbf16>, vector<8x8xbf16>, vector<8x8xf32> -> vector<8x8xf32>
      %166 = vector.broadcast %cst_22 : f32 to vector<8x8xf32>
      %167 = arith.mulf %165, %166 : vector<8x8xf32>
      %168 = arith.addf %167, %5 : vector<8x8xf32>
      %cst_82 = arith.constant dense<0xFF800000> : vector<8xf32>
      %169 = vector.multi_reduction <maximumf>, %168, %cst_82 [1] : vector<8x8xf32> to vector<8xf32>
      %170 = vector.shape_cast %169 : vector<8xf32> to vector<8x1xf32>
      %171 = vector.broadcast %170 : vector<8x1xf32> to vector<8x8xf32>
      %172 = arith.subf %168, %171 : vector<8x8xf32>
      %173 = math.exp %172 : vector<8x8xf32>
      %cst_83 = arith.constant dense<0.000000e+00> : vector<8xf32>
      %174 = vector.multi_reduction <add>, %173, %cst_83 [1] : vector<8x8xf32> to vector<8xf32>
      %175 = vector.shape_cast %174 : vector<8xf32> to vector<8x1xf32>
      %176 = tpu.reciprocal %175 {approx = true} : vector<8x1xf32> -> vector<8x1xf32>
      %177 = vector.broadcast %176 : vector<8x1xf32> to vector<8x8xf32>
      %178 = arith.mulf %173, %177 : vector<8x8xf32>
      %179 = arith.truncf %178 : vector<8x8xf32> to vector<8x8xbf16>
      %cst_84 = arith.constant dense<0.000000e+00> : vector<8x8xf32>
      %180 = tpu.matmul %179, %164, %cst_84 {dimension_numbers = #tpu.dot_dimension_numbers<[1], [0], [0], [1], [0, 0, 1, 1], [], []>} : vector<8x8xbf16>, vector<8x8xbf16>, vector<8x8xf32> -> vector<8x8xf32>
      %181 = arith.truncf %180 : vector<8x8xf32> to vector<8x8xbf16>
      %c0_85 = arith.constant 0 : index
      %c16 = arith.constant 16 : index
      %182 = vector.load %arg23[%c0_85, %c16] : memref<8x32xbf16, #tpu.memory_space<vmem>>, vector<8x8xbf16>
      tpu.vector_store %arg23[%c0_85, %c16], %181 {strides = array<i32>} : memref<8x32xbf16, #tpu.memory_space<vmem>>, vector<8x8xbf16>,
      %183 = vector.extract_strided_slice %115 {offsets = [0, 24], sizes = [8, 8], strides = [1, 1]} : vector<8x32xbf16> to vector<8x8xbf16>
      %184 = vector.extract_strided_slice %117 {offsets = [0, 24], sizes = [8, 8], strides = [1, 1]} : vector<8x32xbf16> to vector<8x8xbf16>
      %185 = vector.extract_strided_slice %119 {offsets = [0, 24], sizes = [8, 8], strides = [1, 1]} : vector<8x32xbf16> to vector<8x8xbf16>
      %cst_86 = arith.constant dense<0.000000e+00> : vector<8x8xf32>
      %186 = tpu.matmul %183, %184, %cst_86 {dimension_numbers = #tpu.dot_dimension_numbers<[1], [1], [0], [0], [0, 0, 1, 0], [], []>} : vector<8x8xbf16>, vector<8x8xbf16>, vector<8x8xf32> -> vector<8x8xf32>
      %187 = vector.broadcast %cst_22 : f32 to vector<8x8xf32>
      %188 = arith.mulf %186, %187 : vector<8x8xf32>
      %189 = arith.addf %188, %5 : vector<8x8xf32>
      %cst_87 = arith.constant dense<0xFF800000> : vector<8xf32>
      %190 = vector.multi_reduction <maximumf>, %189, %cst_87 [1] : vector<8x8xf32> to vector<8xf32>
      %191 = vector.shape_cast %190 : vector<8xf32> to vector<8x1xf32>
      %192 = vector.broadcast %191 : vector<8x1xf32> to vector<8x8xf32>
      %193 = arith.subf %189, %192 : vector<8x8xf32>
      %194 = math.exp %193 : vector<8x8xf32>
      %cst_88 = arith.constant dense<0.000000e+00> : vector<8xf32>
      %195 = vector.multi_reduction <add>, %194, %cst_88 [1] : vector<8x8xf32> to vector<8xf32>
      %196 = vector.shape_cast %195 : vector<8xf32> to vector<8x1xf32>
      %197 = tpu.reciprocal %196 {approx = true} : vector<8x1xf32> -> vector<8x1xf32>
      %198 = vector.broadcast %197 : vector<8x1xf32> to vector<8x8xf32>
      %199 = arith.mulf %194, %198 : vector<8x8xf32>
      %200 = arith.truncf %199 : vector<8x8xf32> to vector<8x8xbf16>
      %cst_89 = arith.constant dense<0.000000e+00> : vector<8x8xf32>
      %201 = tpu.matmul %200, %185, %cst_89 {dimension_numbers = #tpu.dot_dimension_numbers<[1], [0], [0], [1], [0, 0, 1, 1], [], []>} : vector<8x8xbf16>, vector<8x8xbf16>, vector<8x8xf32> -> vector<8x8xf32>
      %202 = arith.truncf %201 : vector<8x8xf32> to vector<8x8xbf16>
      %c0_90 = arith.constant 0 : index
      %c24 = arith.constant 24 : index
      %203 = vector.load %arg23[%c0_90, %c24] : memref<8x32xbf16, #tpu.memory_space<vmem>>, vector<8x8xbf16>
      tpu.vector_store %arg23[%c0_90, %c24], %202 {strides = array<i32>} : memref<8x32xbf16, #tpu.memory_space<vmem>>, vector<8x8xbf16>,
      %c0_91 = arith.constant 0 : index
      %c0_92 = arith.constant 0 : index
      %204 = vector.load %arg23[%c0_91, %c0_92] : memref<8x32xbf16, #tpu.memory_space<vmem>>, vector<8x32xbf16>
      %c0_93 = arith.constant 0 : index
      %c0_94 = arith.constant 0 : index
      %205 = vector.load %arg7[%c0_93, %c0_94] : memref<32x32xbf16, #tpu.memory_space<vmem>>, vector<32x32xbf16>
      %cst_95 = arith.constant dense<0.000000e+00> : vector<8x32xf32>
      %206 = tpu.matmul %204, %205, %cst_95 {dimension_numbers = #tpu.dot_dimension_numbers<[1], [0], [0], [1], [0, 0, 1, 1], [], []>} : vector<8x32xbf16>, vector<32x32xbf16>, vector<8x32xf32> -> vector<8x32xf32>
      %207 = arith.index_cast %113 : i32 to index
      %c0_96 = arith.constant 0 : index
      %208 = vector.load %arg24[%207, %c0_96] : memref<16x32xf32, #tpu.memory_space<vmem>>, vector<8x32xf32>
      tpu.vector_store %arg24[%207, %c0_96], %206 {strides = array<i32>} : memref<16x32xf32, #tpu.memory_space<vmem>>, vector<8x32xf32>,
    }
    %c2_i32_23 = arith.constant 2 : i32
    %c0_24 = arith.constant 0 : index
    %c0_25 = arith.constant 0 : index
    %29 = vector.load %arg24[%c0_24, %c0_25] : memref<16x32xf32, #tpu.memory_space<vmem>>, vector<16x32xf32>
    %c0_26 = arith.constant 0 : index
    %c0_27 = arith.constant 0 : index
    %30 = vector.load %arg8[%c0_26, %c0_27] : memref<1x32xf32, #tpu.memory_space<vmem>>, vector<1x32xf32>
    %31 = vector.broadcast %30 : vector<1x32xf32> to vector<16x32xf32>
    %32 = arith.addf %29, %31 : vector<16x32xf32>
    %33 = arith.extf %7 : vector<16x32xbf16> to vector<16x32xf32>
    %34 = arith.addf %32, %33 : vector<16x32xf32>
    %c0_28 = arith.constant 0 : index
    %c0_29 = arith.constant 0 : index
    %35 = vector.load %arg9[%c0_28, %c0_29] : memref<1x32xf32, #tpu.memory_space<vmem>>, vector<1x32xf32>
    %c0_30 = arith.constant 0 : index
    %c0_31 = arith.constant 0 : index
    %36 = vector.load %arg10[%c0_30, %c0_31] : memref<1x32xf32, #tpu.memory_space<vmem>>, vector<1x32xf32>
    %cst_32 = arith.constant dense<0.000000e+00> : vector<16xf32>
    %37 = vector.multi_reduction <add>, %34, %cst_32 [1] : vector<16x32xf32> to vector<16xf32>
    %38 = vector.shape_cast %37 : vector<16xf32> to vector<16x1xf32>
    %cst_33 = arith.constant 3.200000e+01 : f32
    %39 = vector.broadcast %cst_33 : f32 to vector<16x1xf32>
    %40 = arith.divf %38, %39 : vector<16x1xf32>
    %41 = vector.broadcast %40 : vector<16x1xf32> to vector<16x32xf32>
    %42 = arith.subf %34, %41 : vector<16x32xf32>
    %43 = arith.mulf %42, %42 : vector<16x32xf32>
    %cst_34 = arith.constant dense<0.000000e+00> : vector<16xf32>
    %44 = vector.multi_reduction <add>, %43, %cst_34 [1] : vector<16x32xf32> to vector<16xf32>
    %45 = vector.shape_cast %44 : vector<16xf32> to vector<16x1xf32>
    %cst_35 = arith.constant 3.200000e+01 : f32
    %46 = vector.broadcast %cst_35 : f32 to vector<16x1xf32>
    %47 = arith.divf %45, %46 : vector<16x1xf32>
    %48 = vector.broadcast %40 : vector<16x1xf32> to vector<16x32xf32>
    %49 = arith.subf %34, %48 : vector<16x32xf32>
    %cst_36 = arith.constant 9.99999974E-6 : f32
    %50 = vector.broadcast %cst_36 : f32 to vector<16x1xf32>
    %51 = arith.addf %47, %50 : vector<16x1xf32>
    %52 = math.rsqrt %51 : vector<16x1xf32>
    %53 = vector.broadcast %52 : vector<16x1xf32> to vector<16x32xf32>
    %54 = arith.mulf %49, %53 : vector<16x32xf32>
    %55 = vector.broadcast %35 : vector<1x32xf32> to vector<16x32xf32>
    %56 = arith.mulf %54, %55 : vector<16x32xf32>
    %57 = vector.broadcast %36 : vector<1x32xf32> to vector<16x32xf32>
    %58 = arith.addf %56, %57 : vector<16x32xf32>
    %59 = arith.truncf %58 : vector<16x32xf32> to vector<16x32xbf16>
    %c0_37 = arith.constant 0 : index
    %c0_38 = arith.constant 0 : index
    %60 = vector.load %arg11[%c0_37, %c0_38] : memref<32x32xbf16, #tpu.memory_space<vmem>>, vector<32x32xbf16>
    %cst_39 = arith.constant dense<0.000000e+00> : vector<16x32xf32>
    %61 = tpu.matmul %59, %60, %cst_39 {dimension_numbers = #tpu.dot_dimension_numbers<[1], [0], [0], [1], [0, 0, 1, 1], [], []>} : vector<16x32xbf16>, vector<32x32xbf16>, vector<16x32xf32> -> vector<16x32xf32>
    %c0_40 = arith.constant 0 : index
    %c0_41 = arith.constant 0 : index
    %62 = vector.load %arg12[%c0_40, %c0_41] : memref<1x32xf32, #tpu.memory_space<vmem>>, vector<1x32xf32>
    %63 = vector.broadcast %62 : vector<1x32xf32> to vector<16x32xf32>
    %64 = arith.addf %61, %63 : vector<16x32xf32>
    %cst_42 = arith.constant 0.000000e+00 : f32
    %65 = vector.broadcast %cst_42 : f32 to vector<16x32xf32>
    %66 = arith.maximumf %64, %65 : vector<16x32xf32>
    %67 = arith.truncf %66 : vector<16x32xf32> to vector<16x32xbf16>
    %c0_43 = arith.constant 0 : index
    %c0_44 = arith.constant 0 : index
    %68 = vector.load %arg13[%c0_43, %c0_44] : memref<32x32xbf16, #tpu.memory_space<vmem>>, vector<32x32xbf16>
    %cst_45 = arith.constant dense<0.000000e+00> : vector<16x32xf32>
    %69 = tpu.matmul %67, %68, %cst_45 {dimension_numbers = #tpu.dot_dimension_numbers<[1], [0], [0], [1], [0, 0, 1, 1], [], []>} : vector<16x32xbf16>, vector<32x32xbf16>, vector<16x32xf32> -> vector<16x32xf32>
    %c0_46 = arith.constant 0 : index
    %c0_47 = arith.constant 0 : index
    %70 = vector.load %arg14[%c0_46, %c0_47] : memref<1x32xf32, #tpu.memory_space<vmem>>, vector<1x32xf32>
    %71 = vector.broadcast %70 : vector<1x32xf32> to vector<16x32xf32>
    %72 = arith.addf %69, %71 : vector<16x32xf32>
    %73 = arith.addf %72, %58 : vector<16x32xf32>
    %c0_48 = arith.constant 0 : index
    %c0_49 = arith.constant 0 : index
    %74 = vector.load %arg15[%c0_48, %c0_49] : memref<1x32xf32, #tpu.memory_space<vmem>>, vector<1x32xf32>
    %c0_50 = arith.constant 0 : index
    %c0_51 = arith.constant 0 : index
    %75 = vector.load %arg16[%c0_50, %c0_51] : memref<1x32xf32, #tpu.memory_space<vmem>>, vector<1x32xf32>
    %cst_52 = arith.constant dense<0.000000e+00> : vector<16xf32>
    %76 = vector.multi_reduction <add>, %73, %cst_52 [1] : vector<16x32xf32> to vector<16xf32>
    %77 = vector.shape_cast %76 : vector<16xf32> to vector<16x1xf32>
    %cst_53 = arith.constant 3.200000e+01 : f32
    %78 = vector.broadcast %cst_53 : f32 to vector<16x1xf32>
    %79 = arith.divf %77, %78 : vector<16x1xf32>
    %80 = vector.broadcast %79 : vector<16x1xf32> to vector<16x32xf32>
    %81 = arith.subf %73, %80 : vector<16x32xf32>
    %82 = arith.mulf %81, %81 : vector<16x32xf32>
    %cst_54 = arith.constant dense<0.000000e+00> : vector<16xf32>
    %83 = vector.multi_reduction <add>, %82, %cst_54 [1] : vector<16x32xf32> to vector<16xf32>
    %84 = vector.shape_cast %83 : vector<16xf32> to vector<16x1xf32>
    %cst_55 = arith.constant 3.200000e+01 : f32
    %85 = vector.broadcast %cst_55 : f32 to vector<16x1xf32>
    %86 = arith.divf %84, %85 : vector<16x1xf32>
    %87 = vector.broadcast %79 : vector<16x1xf32> to vector<16x32xf32>
    %88 = arith.subf %73, %87 : vector<16x32xf32>
    %cst_56 = arith.constant 9.99999974E-6 : f32
    %89 = vector.broadcast %cst_56 : f32 to vector<16x1xf32>
    %90 = arith.addf %86, %89 : vector<16x1xf32>
    %91 = math.rsqrt %90 : vector<16x1xf32>
    %92 = vector.broadcast %91 : vector<16x1xf32> to vector<16x32xf32>
    %93 = arith.mulf %88, %92 : vector<16x32xf32>
    %94 = vector.broadcast %74 : vector<1x32xf32> to vector<16x32xf32>
    %95 = arith.mulf %93, %94 : vector<16x32xf32>
    %96 = vector.broadcast %75 : vector<1x32xf32> to vector<16x32xf32>
    %97 = arith.addf %95, %96 : vector<16x32xf32>
    %c0_57 = arith.constant 0 : index
    %c0_58 = arith.constant 0 : index
    %98 = vector.load %arg17[%c0_57, %c0_58] : memref<1x32xf32, #tpu.memory_space<vmem>>, vector<1x32xf32>
    %cst_59 = arith.constant dense<0.000000e+00> : vector<1x16xf32>
    %99 = tpu.matmul %98, %97, %cst_59 {dimension_numbers = #tpu.dot_dimension_numbers<[1], [1], [0], [0], [0, 0, 1, 0], [], []>} : vector<1x32xf32>, vector<16x32xf32>, vector<1x16xf32> -> vector<1x16xf32>
    %c0_60 = arith.constant 0 : index
    %c0_61 = arith.constant 0 : index
    %100 = vector.load %arg18[%c0_60, %c0_61] : memref<1x1xf32, #tpu.memory_space<vmem>>, vector<1x1xf32>
    %101 = vector.extract %100[0, 0] : f32 from vector<1x1xf32>
    %102 = vector.extract_strided_slice %99 {offsets = [0, 0], sizes = [1, 8], strides = [1, 1]} : vector<1x16xf32> to vector<1x8xf32>
    %103 = vector.broadcast %101 : f32 to vector<1x8xf32>
    %104 = arith.addf %102, %103 : vector<1x8xf32>
    %c0_62 = arith.constant 0 : index
    %c0_63 = arith.constant 0 : index
    %105 = vector.load %arg19[%c0_62, %c0_63] : memref<2x8xf32, #tpu.memory_space<vmem>>, vector<1x8xf32>
    tpu.vector_store %arg19[%c0_62, %c0_63], %104 {strides = array<i32>} : memref<2x8xf32, #tpu.memory_space<vmem>>, vector<1x8xf32>,
    %106 = vector.extract_strided_slice %99 {offsets = [0, 8], sizes = [1, 8], strides = [1, 1]} : vector<1x16xf32> to vector<1x8xf32>
    %107 = vector.broadcast %101 : f32 to vector<1x8xf32>
    %108 = arith.addf %106, %107 : vector<1x8xf32>
    %c1 = arith.constant 1 : index
    %c0_64 = arith.constant 0 : index
    %109 = vector.load %arg19[%c1, %c0_64] : memref<2x8xf32, #tpu.memory_space<vmem>>, vector<1x8xf32>
    tpu.vector_store %arg19[%c1, %c0_64], %108 {strides = array<i32>} : memref<2x8xf32, #tpu.memory_space<vmem>>, vector<1x8xf32>,
    return
  }
  func.func @transform_0(%arg0: i32) -> (i32, i32, i32) {
    %c0_i32 = arith.constant 0 : i32
    %c0_i32_0 = arith.constant 0 : i32
    %c0_i32_1 = arith.constant 0 : i32
    return %arg0, %c0_i32, %c0_i32_0 : i32, i32, i32
  }
  func.func @transform_1(%arg0: i32) -> (i32, i32, i32) {
    %c0_i32 = arith.constant 0 : i32
    %c0_i32_0 = arith.constant 0 : i32
    %c0_i32_1 = arith.constant 0 : i32
    return %arg0, %c0_i32, %c0_i32_0 : i32, i32, i32
  }
  func.func @transform_2(%arg0: i32) -> (i32, i32) {
    %c0_i32 = arith.constant 0 : i32
    %c0_i32_0 = arith.constant 0 : i32
    %c0_i32_1 = arith.constant 0 : i32
    return %c0_i32, %c0_i32_0 : i32, i32
  }
  func.func @transform_3(%arg0: i32) -> (i32, i32) {
    %c0_i32 = arith.constant 0 : i32
    %c0_i32_0 = arith.constant 0 : i32
    %c0_i32_1 = arith.constant 0 : i32
    return %c0_i32, %c0_i32_0 : i32, i32
  }
  func.func @transform_4(%arg0: i32) -> (i32, i32) {
    %c0_i32 = arith.constant 0 : i32
    %c0_i32_0 = arith.constant 0 : i32
    %c0_i32_1 = arith.constant 0 : i32
    return %c0_i32, %c0_i32_0 : i32, i32
  }
  func.func @transform_5(%arg0: i32) -> (i32, i32) {
    %c0_i32 = arith.constant 0 : i32
    %c0_i32_0 = arith.constant 0 : i32
    %c0_i32_1 = arith.constant 0 : i32
    return %c0_i32, %c0_i32_0 : i32, i32
  }
  func.func @transform_6(%arg0: i32) -> (i32, i32) {
    %c0_i32 = arith.constant 0 : i32
    %c0_i32_0 = arith.constant 0 : i32
    %c0_i32_1 = arith.constant 0 : i32
    return %c0_i32, %c0_i32_0 : i32, i32
  }
  func.func @transform_7(%arg0: i32) -> (i32, i32) {
    %c0_i32 = arith.constant 0 : i32
    %c0_i32_0 = arith.constant 0 : i32
    %c0_i32_1 = arith.constant 0 : i32
    return %c0_i32, %c0_i32_0 : i32, i32
  }
  func.func @transform_8(%arg0: i32) -> (i32, i32) {
    %c0_i32 = arith.constant 0 : i32
    %c0_i32_0 = arith.constant 0 : i32
    %c0_i32_1 = arith.constant 0 : i32
    return %c0_i32, %c0_i32_0 : i32, i32
  }
  func.func @transform_9(%arg0: i32) -> (i32, i32) {
    %c0_i32 = arith.constant 0 : i32
    %c0_i32_0 = arith.constant 0 : i32
    %c0_i32_1 = arith.constant 0 : i32
    return %c0_i32, %c0_i32_0 : i32, i32
  }
  func.func @transform_10(%arg0: i32) -> (i32, i32) {
    %c0_i32 = arith.constant 0 : i32
    %c0_i32_0 = arith.constant 0 : i32
    %c0_i32_1 = arith.constant 0 : i32
    return %c0_i32, %c0_i32_0 : i32, i32
  }
  func.func @transform_11(%arg0: i32) -> (i32, i32) {
    %c0_i32 = arith.constant 0 : i32
    %c0_i32_0 = arith.constant 0 : i32
    %c0_i32_1 = arith.constant 0 : i32
    return %c0_i32, %c0_i32_0 : i32, i32
  }
  func.func @transform_12(%arg0: i32) -> (i32, i32) {
    %c0_i32 = arith.constant 0 : i32
    %c0_i32_0 = arith.constant 0 : i32
    %c0_i32_1 = arith.constant 0 : i32
    return %c0_i32, %c0_i32_0 : i32, i32
  }
  func.func @transform_13(%arg0: i32) -> (i32, i32) {
    %c0_i32 = arith.constant 0 : i32
    %c0_i32_0 = arith.constant 0 : i32
    %c0_i32_1 = arith.constant 0 : i32
    return %c0_i32, %c0_i32_0 : i32, i32
  }
  func.func @transform_14(%arg0: i32) -> (i32, i32) {
    %c0_i32 = arith.constant 0 : i32
    %c0_i32_0 = arith.constant 0 : i32
    %c0_i32_1 = arith.constant 0 : i32
    return %c0_i32, %c0_i32_0 : i32, i32
  }
  func.func @transform_15(%arg0: i32) -> (i32, i32) {
    %c0_i32 = arith.constant 0 : i32
    %c0_i32_0 = arith.constant 0 : i32
    %c0_i32_1 = arith.constant 0 : i32
    return %c0_i32, %c0_i32_0 : i32, i32
  }
  func.func @transform_16(%arg0: i32) -> (i32, i32) {
    %c0_i32 = arith.constant 0 : i32
    %c0_i32_0 = arith.constant 0 : i32
    %c0_i32_1 = arith.constant 0 : i32
    return %c0_i32, %c0_i32_0 : i32, i32
  }
  func.func @transform_17(%arg0: i32) -> (i32, i32) {
    %c0_i32 = arith.constant 0 : i32
    %c0_i32_0 = arith.constant 0 : i32
    %c0_i32_1 = arith.constant 0 : i32
    return %c0_i32, %c0_i32_0 : i32, i32
  }
  func.func @transform_18(%arg0: i32) -> (i32, i32) {
    %c0_i32 = arith.constant 0 : i32
    %c0_i32_0 = arith.constant 0 : i32
    return %arg0, %c0_i32 : i32, i32
  }
}

</mosaic_0001>

<llo_original>
// kernel: tpu_custom_call.1
$region0: #{tpu_custom_call.1}
  #allocation0 [shape = 'u32[]', space=smem, size = 0x4, offset = 0x4, fixed_abs, tag = 'smem constant byte address 0x4 - core index']
  #allocation1 [shape = 'u32[144,128]{1,0:T(1,128)}', space=vmem, size = 0x12000, scoped, tag = 'internal scratch']
  #allocation2 [shape = 'bf16[16,32]{1,0:T(8,128)(2,1)}', space=vmem, size = 0x1000, scoped, tag = 'scratch operand']
  #allocation3 [shape = 'bf16[16,32]{1,0:T(8,128)(2,1)}', space=vmem, size = 0x1000, scoped, tag = 'scratch operand']
  #allocation4 [shape = 'bf16[16,32]{1,0:T(8,128)(2,1)}', space=vmem, size = 0x1000, scoped, tag = 'scratch operand']
  #allocation5 [shape = 'bf16[8,32]{1,0:T(8,128)(2,1)}', space=vmem, size = 0x800, scoped, tag = 'scratch operand']
  #allocation6 [shape = 'f32[16,32]{1,0:T(8,128)}', space=vmem, size = 0x2000, scoped, tag = 'scratch operand']
  #allocation7 [shape = 'f32[1,1]{1,0:T(1,128)S(1)}', space=vmem, size = 0x200, scoped, tag = 'scoped memory for tpu_custom_call.1']
  %s0 = inlined_call_operand.hbm [shape: bf16[2,8,32], index: 0, kind: input, shape index: {}]
  %s1 = inlined_call_operand.hbm [shape: bf16[2,8,32], index: 1, kind: input, shape index: {}]
  %s2 = inlined_call_operand.hbm [shape: bf16[32,32], index: 2, kind: input, shape index: {}]
  %s3 = inlined_call_operand.vmem [shape: f32[1,32], index: 3, kind: input, shape index: {}]
  %s4 = inlined_call_operand.hbm [shape: bf16[32,64], index: 4, kind: input, shape index: {}]
  %s5 = inlined_call_operand.vmem [shape: f32[1,64], index: 5, kind: input, shape index: {}]
  %s6 = inlined_call_operand.hbm [shape: bf16[32,32], index: 6, kind: input, shape index: {}]
  %s7 = inlined_call_operand.vmem [shape: f32[1,32], index: 7, kind: input, shape index: {}]
  %s8 = inlined_call_operand.vmem [shape: f32[1,32], index: 8, kind: input, shape index: {}]
  %s9 = inlined_call_operand.hbm [shape: f32[1,32], index: 9, kind: input, shape index: {}]
  %s10 = inlined_call_operand.vmem [shape: bf16[32,32], index: 10, kind: input, shape index: {}]
  %s11 = inlined_call_operand.vmem [shape: f32[1,32], index: 11, kind: input, shape index: {}]
  %s12 = inlined_call_operand.hbm [shape: bf16[32,32], index: 12, kind: input, shape index: {}]
  %s13 = inlined_call_operand.vmem [shape: f32[1,32], index: 13, kind: input, shape index: {}]
  %s14 = inlined_call_operand.vmem [shape: f32[1,32], index: 14, kind: input, shape index: {}]
  %s15 = inlined_call_operand.vmem [shape: f32[1,32], index: 15, kind: input, shape index: {}]
  %s16 = inlined_call_operand.vmem [shape: f32[1,32], index: 16, kind: input, shape index: {}]
  %s17 = inlined_call_operand.<no memory space> [shape: f32[1,1], index: 17, kind: input, shape index: {}]
  %s18 = inlined_call_operand.hbm [shape: f32[2,8], index: 18, kind: output, shape index: {}]
  %s19 = sld [smem:[#allocation0]]
  $region117: #{tpu_custom_call.1} parent=0
    _
  %s21 = ssub.s32 1, %s19
  %s22 = scalar_select 0, %s21, %s19
  %v23 = vstv %s17
  %24 = vst [vmem:[#allocation7] sm:$0x1] %v23
  $region1: #{tpu_custom_call.1} parent=0
    #allocation8 [shape = 'u8[4096]{0}', space=vmem, size = 0x1000, scoped, tag = 'input window, operand 0, single buffered']
    #allocation9 [shape = 's32[1]{0}', space=sflag, size = 0x4, scoped, tag = 'scoped memory for tpu_custom_call.1']
    #allocation10 [shape = 's32[1]{0}', space=sflag, size = 0x4, scoped, tag = 'scoped memory for tpu_custom_call.1']
    #allocation11 [shape = 'u8[4096]{0}', space=vmem, size = 0x1000, scoped, tag = 'input window, operand 1, single buffered']
    #allocation12 [shape = 's32[1]{0}', space=sflag, size = 0x4, scoped, tag = 'scoped memory for tpu_custom_call.1']
    #allocation13 [shape = 'u8[8192]{0}', space=vmem, size = 0x2000, scoped, tag = 'input window, operand 2, single buffered']
    #allocation14 [shape = 'u8[8192]{0}', space=vmem, size = 0x2000, scoped, tag = 'input window, operand 4, single buffered']
    #allocation15 [shape = 's32[1]{0}', space=sflag, size = 0x4, scoped, tag = 'scoped memory for tpu_custom_call.1']
    #allocation16 [shape = 'u8[8192]{0}', space=vmem, size = 0x2000, scoped, tag = 'input window, operand 6, single buffered']
    #allocation17 [shape = 'u8[512]{0}', space=vmem, size = 0x400, scoped, tag = 'input window, operand 9, single buffered']
    #allocation18 [shape = 's32[1]{0}', space=sflag, size = 0x4, scoped, tag = 'scoped memory for tpu_custom_call.1']
    #allocation19 [shape = 'u8[8192]{0}', space=vmem, size = 0x2000, scoped, tag = 'input window, operand 12, single buffered']
    #allocation20 [shape = 'u8[1024]{0}', space=vmem, size = 0x400, scoped, tag = 'output window, operand 0, single buffered']
    %25 = vsyncpa [#allocation9], 0
    %26 = vsyncpa [#allocation12], 0
    %27 = vsyncpa [#allocation15], 0
    %28 = vsyncpa [#allocation18], 0
    %29 = vsyncpa [#allocation10], 0
    // Predicated region
    $region2: #{tpu_custom_call.1} parent=1 // pred_check
      _
    $region3: #{tpu_custom_call.1} parent=1 // pred_check_branch
      %31 = sbr.rel (0) target = $region5
    $region4: #{tpu_custom_call.1} parent=1 // pred_region
      %s33 = ssub.s32 128, 128
      %34 = vsyncadd [#allocation9], %s33
      %s35 = sshll.u32 [#allocation8], 4
      %s36 = int_to_ptr.vmem [resolvable:$true] %s35
      %41 = dma.hbm_to_vmem [thread:$0]  %s0, 128, %s36, [#allocation9], 64, 64, 4
    $region5: #{tpu_custom_call.1} parent=1 // pred_fallthru
      _
    // Predicated region
    $region6: #{tpu_custom_call.1} parent=1 // pred_check
      _
    $region7: #{tpu_custom_call.1} parent=1 // pred_check_branch
      %43 = sbr.rel (0) target = $region9
    $region8: #{tpu_custom_call.1} parent=1 // pred_region
      %s45 = ssub.s32 128, 128
      %46 = vsyncadd [#allocation12], %s45
      %s47 = sshll.u32 [#allocation11], 4
      %s48 = int_to_ptr.vmem [resolvable:$true] %s47
      %53 = dma.hbm_to_vmem [thread:$0]  %s1, 128, %s48, [#allocation12], 64, 64, 4
    $region9: #{tpu_custom_call.1} parent=1 // pred_fallthru
      _
    // Predicated region
    $region10: #{tpu_custom_call.1} parent=1 // pred_check
      _
    $region11: #{tpu_custom_call.1} parent=1 // pred_check_branch
      %55 = sbr.rel (0) target = $region13
    $region12: #{tpu_custom_call.1} parent=1 // pred_region
      %s57 = ssub.s32 256, 256
      %58 = vsyncadd [#allocation12], %s57
      %s59 = sshll.u32 [#allocation13], 4
      %s60 = int_to_ptr.vmem [resolvable:$true] %s59
      %65 = dma.hbm_to_vmem [thread:$0]  %s2, 256, %s60, [#allocation12], 64, 64, 4
    $region13: #{tpu_custom_call.1} parent=1 // pred_fallthru
      _
    // Predicated region
    $region14: #{tpu_custom_call.1} parent=1 // pred_check
      _
    $region15: #{tpu_custom_call.1} parent=1 // pred_check_branch
      %67 = sbr.rel (0) target = $region17
    $region16: #{tpu_custom_call.1} parent=1 // pred_region
      _
    $region17: #{tpu_custom_call.1} parent=1 // pred_fallthru
      _
    // Predicated region
    $region18: #{tpu_custom_call.1} parent=1 // pred_check
      _
    $region19: #{tpu_custom_call.1} parent=1 // pred_check_branch
      %69 = sbr.rel (0) target = $region21
    $region20: #{tpu_custom_call.1} parent=1 // pred_region
      %s71 = ssub.s32 256, 256
      %72 = vsyncadd [#allocation15], %s71
      %s73 = sshll.u32 [#allocation14], 4
      %s74 = int_to_ptr.vmem [resolvable:$true] %s73
      %79 = dma.hbm_to_vmem [thread:$0]  %s4, 256, %s74, [#allocation15], 64, 64, 4
    $region21: #{tpu_custom_call.1} parent=1 // pred_fallthru
      _
    // Predicated region
    $region22: #{tpu_custom_call.1} parent=1 // pred_check
      _
    $region23: #{tpu_custom_call.1} parent=1 // pred_check_branch
      %81 = sbr.rel (0) target = $region25
    $region24: #{tpu_custom_call.1} parent=1 // pred_region
      _
    $region25: #{tpu_custom_call.1} parent=1 // pred_fallthru
      _
    // Predicated region
    $region26: #{tpu_custom_call.1} parent=1 // pred_check
      _
    $region27: #{tpu_custom_call.1} parent=1 // pred_check_branch
      %83 = sbr.rel (0) target = $region29
    $region28: #{tpu_custom_call.1} parent=1 // pred_region
      %s85 = ssub.s32 256, 256
      %86 = vsyncadd [#allocation15], %s85
      %s87 = sshll.u32 [#allocation16], 4
      %s88 = int_to_ptr.vmem [resolvable:$true] %s87
      %93 = dma.hbm_to_vmem [thread:$0]  %s6, 256, %s88, [#allocation15], 64, 64, 4
    $region29: #{tpu_custom_call.1} parent=1 // pred_fallthru
      _
    // Predicated region
    $region30: #{tpu_custom_call.1} parent=1 // pred_check
      _
    $region31: #{tpu_custom_call.1} parent=1 // pred_check_branch
      %95 = sbr.rel (0) target = $region33
    $region32: #{tpu_custom_call.1} parent=1 // pred_region
      _
    $region33: #{tpu_custom_call.1} parent=1 // pred_fallthru
      _
    // Predicated region
    $region34: #{tpu_custom_call.1} parent=1 // pred_check
      _
    $region35: #{tpu_custom_call.1} parent=1 // pred_check_branch
      %97 = sbr.rel (0) target = $region37
    $region36: #{tpu_custom_call.1} parent=1 // pred_region
      _
    $region37: #{tpu_custom_call.1} parent=1 // pred_fallthru
      _
    // Predicated region
    $region38: #{tpu_custom_call.1} parent=1 // pred_check
      _
    $region39: #{tpu_custom_call.1} parent=1 // pred_check_branch
      %99 = sbr.rel (0) target = $region41
    $region40: #{tpu_custom_call.1} parent=1 // pred_region
      %s101 = ssub.s32 16, 16
      %102 = vsyncadd [#allocation18], %s101
      %s104 = sshll.u32 [#allocation17], 4
      %s105 = int_to_ptr.vmem [resolvable:$true] %s104
      %107 = dma.hbm_to_vmem [thread:$0]  %s9, 16, %s105, [#allocation18]
    $region41: #{tpu_custom_call.1} parent=1 // pred_fallthru
      _
    // Predicated region
    $region42: #{tpu_custom_call.1} parent=1 // pred_check
      _
    $region43: #{tpu_custom_call.1} parent=1 // pred_check_branch
      %109 = sbr.rel (0) target = $region45
    $region44: #{tpu_custom_call.1} parent=1 // pred_region
      _
    $region45: #{tpu_custom_call.1} parent=1 // pred_fallthru
      _
    // Predicated region
    $region46: #{tpu_custom_call.1} parent=1 // pred_check
      _
    $region47: #{tpu_custom_call.1} parent=1 // pred_check_branch
      %111 = sbr.rel (0) target = $region49
    $region48: #{tpu_custom_call.1} parent=1 // pred_region
      _
    $region49: #{tpu_custom_call.1} parent=1 // pred_fallthru
      _
    // Predicated region
    $region50: #{tpu_custom_call.1} parent=1 // pred_check
      _
    $region51: #{tpu_custom_call.1} parent=1 // pred_check_branch
      %113 = sbr.rel (0) target = $region53
    $region52: #{tpu_custom_call.1} parent=1 // pred_region
      %s115 = ssub.s32 256, 256
      %116 = vsyncadd [#allocation18], %s115
      %s117 = sshll.u32 [#allocation19], 4
      %s118 = int_to_ptr.vmem [resolvable:$true] %s117
      %123 = dma.hbm_to_vmem [thread:$0]  %s12, 256, %s118, [#allocation18], 64, 64, 4
    $region53: #{tpu_custom_call.1} parent=1 // pred_fallthru
      _
    // Predicated region
    $region54: #{tpu_custom_call.1} parent=1 // pred_check
      _
    $region55: #{tpu_custom_call.1} parent=1 // pred_check_branch
      %125 = sbr.rel (0) target = $region57
    $region56: #{tpu_custom_call.1} parent=1 // pred_region
      _
    $region57: #{tpu_custom_call.1} parent=1 // pred_fallthru
      _
    // Predicated region
    $region58: #{tpu_custom_call.1} parent=1 // pred_check
      _
    $region59: #{tpu_custom_call.1} parent=1 // pred_check_branch
      %127 = sbr.rel (0) target = $region61
    $region60: #{tpu_custom_call.1} parent=1 // pred_region
      _
    $region61: #{tpu_custom_call.1} parent=1 // pred_fallthru
      _
    // Predicated region
    $region62: #{tpu_custom_call.1} parent=1 // pred_check
      _
    $region63: #{tpu_custom_call.1} parent=1 // pred_check_branch
      %129 = sbr.rel (0) target = $region65
    $region64: #{tpu_custom_call.1} parent=1 // pred_region
      _
    $region65: #{tpu_custom_call.1} parent=1 // pred_fallthru
      _
    // Predicated region
    $region66: #{tpu_custom_call.1} parent=1 // pred_check
      _
    $region67: #{tpu_custom_call.1} parent=1 // pred_check_branch
      %131 = sbr.rel (0) target = $region69
    $region68: #{tpu_custom_call.1} parent=1 // pred_region
      _
    $region69: #{tpu_custom_call.1} parent=1 // pred_fallthru
      _
    // Predicated region
    $region70: #{tpu_custom_call.1} parent=1 // pred_check
      _
    $region71: #{tpu_custom_call.1} parent=1 // pred_check_branch
      %133 = sbr.rel (0) target = $region73
    $region72: #{tpu_custom_call.1} parent=1 // pred_region
      _
    $region73: #{tpu_custom_call.1} parent=1 // pred_fallthru
      _
    // Predicated region
    $region74: #{tpu_custom_call.1} parent=1 // pred_check
      _
    $region75: #{tpu_custom_call.1} parent=1 // pred_check_branch
      %135 = sbr.rel (0) target = $region77
    $region76: #{tpu_custom_call.1} parent=1 // pred_region
      %136 = dma.done [#allocation9], 128
    $region77: #{tpu_custom_call.1} parent=1 // pred_fallthru
      _
    // Predicated region
    $region78: #{tpu_custom_call.1} parent=1 // pred_check
      _
    $region79: #{tpu_custom_call.1} parent=1 // pred_check_branch
      %138 = sbr.rel (0) target = $region81
    $region80: #{tpu_custom_call.1} parent=1 // pred_region
      %139 = dma.done [#allocation12], 128
    $region81: #{tpu_custom_call.1} parent=1 // pred_fallthru
      _
    // Predicated region
    $region82: #{tpu_custom_call.1} parent=1 // pred_check
      _
    $region83: #{tpu_custom_call.1} parent=1 // pred_check_branch
      %141 = sbr.rel (0) target = $region85
    $region84: #{tpu_custom_call.1} parent=1 // pred_region
      %142 = dma.done [#allocation12], 256
    $region85: #{tpu_custom_call.1} parent=1 // pred_fallthru
      _
    // Predicated region
    $region86: #{tpu_custom_call.1} parent=1 // pred_check
      _
    $region87: #{tpu_custom_call.1} parent=1 // pred_check_branch
      %144 = sbr.rel (0) target = $region89
    $region88: #{tpu_custom_call.1} parent=1 // pred_region
      %145 = dma.done [#allocation15], 256
    $region89: #{tpu_custom_call.1} parent=1 // pred_fallthru
      _
    // Predicated region
    $region90: #{tpu_custom_call.1} parent=1 // pred_check
      _
    $region91: #{tpu_custom_call.1} parent=1 // pred_check_branch
      %147 = sbr.rel (0) target = $region93
    $region92: #{tpu_custom_call.1} parent=1 // pred_region
      %148 = dma.done [#allocation15], 256
    $region93: #{tpu_custom_call.1} parent=1 // pred_fallthru
      _
    // Predicated region
    $region94: #{tpu_custom_call.1} parent=1 // pred_check
      _
    $region95: #{tpu_custom_call.1} parent=1 // pred_check_branch
      %150 = sbr.rel (0) target = $region97
    $region96: #{tpu_custom_call.1} parent=1 // pred_region
      %151 = dma.done [#allocation18], 16
    $region97: #{tpu_custom_call.1} parent=1 // pred_fallthru
      _
    // Predicated region
    $region98: #{tpu_custom_call.1} parent=1 // pred_check
      _
    $region99: #{tpu_custom_call.1} parent=1 // pred_check_branch
      %153 = sbr.rel (0) target = $region101
    $region100: #{tpu_custom_call.1} parent=1 // pred_region
      %154 = dma.done [#allocation18], 256
    $region101: #{tpu_custom_call.1} parent=1 // pred_fallthru
      _
    %v156 = vlaneseq
    %v157 = vshrl.u32 %v156, 7
    %v158 = vlaneseq
    %v159 = vand.u32 %v158, 127
    %vm160 = vcmp.gt.s32.totalorder %v159, %v157
    %v161 = vsel %vm160, -1e+30, 0.0
    %v162 = vld [vmem:[#allocation8] sm:$0xf]
    %v163 = vld [vmem:[#allocation8 + $0x4] sm:$0xf]
    %v164 = vld [vmem:[#allocation11] sm:$0xf]
    %v165 = vld [vmem:[#allocation11 + $0x4] sm:$0xf]
    %v166 = vld [vmem:[#allocation13] sm:$0xf]
    %v167 = vld [vmem:[#allocation13 + $0x4] sm:$0xf]
    %v168 = vld [vmem:[#allocation13 + $0x8] sm:$0xf]
    %v169 = vld [vmem:[#allocation13 + $0xc] sm:$0xf]
    %v170 = vld [vmem:[%s3] sm:$0x1]
    %v172 = vlaneseq
    %v173 = vshrl.u32 %v172, 7
    %v174 = vsub.s32 0, %v173
    %v175 = vrot.slane %v170, %v174
    %v179 = vunpack.c.l.b16 %v162
    %v180 = vunpack.c.l.b16 %v163
    %v181 = vpack.c.b16 %v180, %v179
    %v186 = vunpack.c.l.b16 %v166
    %v187 = vunpack.c.l.b16 %v167
    %v188 = vunpack.c.l.b16 %v168
    %v189 = vunpack.c.l.b16 %v169
    %v190 = vpack.c.b16 %v187, %v186
    %v191 = vpack.c.b16 %v189, %v188
    %vm194 = vcmask 261120
    %v196 = vsel %vm194, %v181, 0
    %198 = vmatprep.subr.bf16.mxu0 0
    %199 = vmatpush1.bf16.msra.mxu0 0
    %200 = vmatprep.subr.bf16.mxu0 0
    %201 = vmatpush1.bf16.msra.mxu0 0
    %202 = vmatprep.subr.bf16.mxu0 0
    %203 = vmatpush1.bf16.msra.mxu0 0
    %204 = vmatprep.subr.bf16.mxu0 0
    %205 = vmatpush1.bf16.msra.mxu0 0
    %206 = vmatprep.subr.bf16.mxu0 0
    %207 = vmatpush1.bf16.msra.mxu0 0
    %208 = vmatprep.subr.bf16.mxu0 0
    %209 = vmatpush1.bf16.msra.mxu0 0
    %210 = vmatprep.subr.bf16.mxu0 0
    %211 = vmatpush1.bf16.msra.mxu0 %v191
    %212 = vmatprep.subr.bf16.mxu0 0
    %213 = vmatpush1.bf16.msra.mxu0 %v190
    %214 = vmatprep.subr.bf16.mxu0 0
    %215 = vmatpush2.bf16.msra.mxu0 0
    %216 = vmatprep.subr.bf16.mxu0 0
    %217 = vmatpush2.bf16.msra.mxu0 0
    %218 = vmatprep.subr.bf16.mxu0 0
    %219 = vmatpush2.bf16.msra.mxu0 0
    %220 = vmatprep.subr.bf16.mxu0 0
    %221 = vmatpush2.bf16.msra.mxu0 0
    %222 = vmatprep.subr.bf16.mxu0 0
    %223 = vmatpush2.bf16.msra.mxu0 0
    %224 = vmatprep.subr.bf16.mxu0 0
    %225 = vmatpush2.bf16.msra.mxu0 0
    %226 = vmatprep.subr.bf16.mxu0 0
    %227 = vmatpush2.bf16.msra.mxu0 0
    %228 = vmatprep.subr.bf16.mxu0 0
    %229 = vmatpush2.bf16.msra.mxu0 0
    %230 = vmatprep.mubr.bf16.mxu0 0
    %231 = vmatmul.mubr.bf16.gmra.mxu0 %v196
    %v232 = vpop.f32.mrf.mxu0
    %v233 = vadd.f32 %v175, %v232
    %v234 = vpop.f32.mrf.mxu0
    %v235 = vpop.f32.mrf.mxu0
    %v236 = vadd.f32 %v175, %v235
    %v237 = vpop.f32.mrf.mxu0
    %238 = vdwg.mxu0
    %v239 = vld [vmem:[#allocation14] sm:$0xf]
    %v240 = vld [vmem:[#allocation14 + $0x4] sm:$0xf]
    %v241 = vld [vmem:[#allocation14 + $0x8] sm:$0xf]
    %v242 = vld [vmem:[#allocation14 + $0xc] sm:$0xf]
    %v243 = vld [vmem:[%s5] sm:$0x1]
    %v245 = vlaneseq
    %v246 = vshrl.u32 %v245, 7
    %v247 = vsub.s32 0, %v246
    %v248 = vrot.slane %v243, %v247
    %v252 = vunpack.c.l.b16 %v164
    %v253 = vunpack.c.l.b16 %v165
    %v254 = vpack.c.b16 %v253, %v252
    %v259 = vunpack.c.l.b16 %v239
    %v260 = vunpack.c.l.b16 %v240
    %v261 = vunpack.c.l.b16 %v241
    %v262 = vunpack.c.l.b16 %v242
    %v263 = vpack.c.b16 %v260, %v259
    %v264 = vpack.c.b16 %v262, %v261
    %v268 = vsel %vm194, %v254, 0
    %270 = vmatprep.subr.bf16.mxu0 0
    %271 = vmatpush1.bf16.msra.mxu0 0
    %272 = vmatprep.subr.bf16.mxu0 0
    %273 = vmatpush1.bf16.msra.mxu0 0
    %274 = vmatprep.subr.bf16.mxu0 0
    %275 = vmatpush1.bf16.msra.mxu0 0
    %276 = vmatprep.subr.bf16.mxu0 0
    %277 = vmatpush1.bf16.msra.mxu0 0
    %278 = vmatprep.subr.bf16.mxu0 0
    %279 = vmatpush1.bf16.msra.mxu0 0
    %280 = vmatprep.subr.bf16.mxu0 0
    %281 = vmatpush1.bf16.msra.mxu0 0
    %282 = vmatprep.subr.bf16.mxu0 0
    %283 = vmatpush1.bf16.msra.mxu0 %v264
    %284 = vmatprep.subr.bf16.mxu0 0
    %285 = vmatpush1.bf16.msra.mxu0 %v263
    %286 = vmatprep.subr.bf16.mxu0 0
    %287 = vmatpush2.bf16.msra.mxu0 0
    %288 = vmatprep.subr.bf16.mxu0 0
    %289 = vmatpush2.bf16.msra.mxu0 0
    %290 = vmatprep.subr.bf16.mxu0 0
    %291 = vmatpush2.bf16.msra.mxu0 0
    %292 = vmatprep.subr.bf16.mxu0 0
    %293 = vmatpush2.bf16.msra.mxu0 0
    %294 = vmatprep.subr.bf16.mxu0 0
    %295 = vmatpush2.bf16.msra.mxu0 0
    %296 = vmatprep.subr.bf16.mxu0 0
    %297 = vmatpush2.bf16.msra.mxu0 0
    %298 = vmatprep.subr.bf16.mxu0 0
    %299 = vmatpush2.bf16.msra.mxu0 0
    %300 = vmatprep.subr.bf16.mxu0 0
    %301 = vmatpush2.bf16.msra.mxu0 0
    %302 = vmatprep.mubr.bf16.mxu0 0
    %303 = vmatmul.mubr.bf16.gmra.mxu0 %v268
    %v304 = vpop.f32.mrf.mxu0
    %v305 = vadd.f32 %v248, %v304
    %v306 = vpop.f32.mrf.mxu0
    %v307 = vpop.f32.mrf.mxu0
    %v308 = vadd.f32 %v248, %v307
    %v309 = vpop.f32.mrf.mxu0
    %310 = vdwg.mxu0
    %v311 = vpack.c.bf16 %v236, %v233
    %v313 = vunpack.c.l.b16 %v311
    %v314 = vunpack.c.h.b16 %v311
    %v315 = vpack.c.b16 %v313, %v313
    %v316 = vpack.c.b16 %v314, %v314
    %vm319 = vcmask 257024
    %320 = vst.msk [vmem:[#allocation2] sm:$0xf] %vm319, %v315
    %321 = vst.msk [vmem:[#allocation2 + $0x4] sm:$0xf] %vm319, %v316
    %v322 = vpack.c.bf16 %v308, %v305
    %v324 = vunpack.c.l.b16 %v322
    %v325 = vunpack.c.h.b16 %v322
    %v326 = vpack.c.b16 %v324, %v324
    %v327 = vpack.c.b16 %v325, %v325
    %330 = vst.msk [vmem:[#allocation3] sm:$0xf] %vm319, %v326
    %331 = vst.msk [vmem:[#allocation3 + $0x4] sm:$0xf] %vm319, %v327
    %332 = vrot.lane.b32.xlu0 %v326, 96
    %v333 = vpop.permute.xlu0 %332
    %334 = vrot.lane.b32.xlu0 %v327, 96
    %v335 = vpop.permute.xlu0 %334
    %338 = vst.msk [vmem:[#allocation4] sm:$0xf] %vm319, %v333
    %339 = vst.msk [vmem:[#allocation4 + $0x4] sm:$0xf] %vm319, %v335
    loop: start=0, step=1, limit=2
    $region102: #{tpu_custom_call.1} parent=1 // loop_pre_header
      _
    $region103: #{tpu_custom_call.1} parent=1 // loop_header
      %s341 = sphi 0, %s345
      %p342 = scmp.ge.s32.totalorder %s341, 2
    $region104: #{tpu_custom_call.1} parent=1 // loop_header_branch
      %344 = sbr.rel (%p342) target = $region108
    $region105: #{tpu_custom_call.1} parent=1 // loop_body
      %s346 = smul.u32 %s341, 8
      %s347 = sshra.s32 %s346, 3
      %s348 = sand.u32 %s346, 7
      %s349 = smul.addr %s347, 4
      %s350 = scalar_lea.vmem [#allocation2], %s349
      %v351 = vld [vmem:[%s350] sm:$0xf]
      %s352 = smul.addr %s347, 4
      %s353 = scalar_lea.vmem [#allocation3], %s352
      %v354 = vld [vmem:[%s353] sm:$0xf]
      %s355 = smul.addr %s347, 4
      %s356 = scalar_lea.vmem [#allocation4], %s355
      %v357 = vld [vmem:[%s356] sm:$0xf]
      %vm358 = vcmask 64512
      %v360 = vsel %vm358, %v351, 0
      %v363 = vsel %vm358, %v354, 0
      %365 = vmatprep.subr.bf16.mxu0 0
      %366 = vmatpush1.bf16.xpose.msra.mxu0 0
      %367 = vmatprep.subr.bf16.mxu0 0
      %368 = vmatpush1.bf16.xpose.msra.mxu0 0
      %369 = vmatprep.subr.bf16.mxu0 0
      %370 = vmatpush1.bf16.xpose.msra.mxu0 0
      %371 = vmatprep.subr.bf16.mxu0 0
      %372 = vmatpush1.bf16.xpose.msra.mxu0 0
      %373 = vmatprep.subr.bf16.mxu0 0
      %374 = vmatpush1.bf16.xpose.msra.mxu0 0
      %375 = vmatprep.subr.bf16.mxu0 0
      %376 = vmatpush1.bf16.xpose.msra.mxu0 0
      %377 = vmatprep.subr.bf16.mxu0 0
      %378 = vmatpush1.bf16.xpose.msra.mxu0 0
      %379 = vmatprep.subr.bf16.mxu0 0
      %380 = vmatpush1.bf16.xpose.msra.mxu0 %v363
      %381 = vmatprep.subr.bf16.mxu0 0
      %382 = vmatpush2.bf16.xpose.msra.mxu0 0
      %383 = vmatprep.subr.bf16.mxu0 0
      %384 = vmatpush2.bf16.xpose.msra.mxu0 0
      %385 = vmatprep.subr.bf16.mxu0 0
      %386 = vmatpush2.bf16.xpose.msra.mxu0 0
      %387 = vmatprep.subr.bf16.mxu0 0
      %388 = vmatpush2.bf16.xpose.msra.mxu0 0
      %389 = vmatprep.subr.bf16.mxu0 0
      %390 = vmatpush2.bf16.xpose.msra.mxu0 0
      %391 = vmatprep.subr.bf16.mxu0 0
      %392 = vmatpush2.bf16.xpose.msra.mxu0 0
      %393 = vmatprep.subr.bf16.mxu0 0
      %394 = vmatpush2.bf16.xpose.msra.mxu0 0
      %395 = vmatprep.subr.bf16.mxu0 0
      %396 = vmatpush2.bf16.xpose.msra.mxu0 0
      %397 = vmatprep.mubr.bf16.mxu0 0
      %398 = vmatmul.mubr.bf16.gmra.mxu0 %v360
      %v399 = vpop.f32.mrf.mxu0
      %v400 = vadd.f32 0.0, %v399
      %v401 = vpop.f32.mrf.mxu0
      %v402 = vpop.f32.mrf.mxu0
      %v403 = vpop.f32.mrf.mxu0
      %404 = vdwg.mxu0
      %v405 = vmul.f32 %v400, 0.35355338
      %v406 = vadd.f32 %v405, %v161
      %v407 = vsel %vm358, %v406, -inf
      %408 = vmax.xlane.f32.xlu0 %v407
      %v409 = vpop.xlane.xlu0 %408
      %v410 = vsub.f32 %v406, %v409
      %v411 = vmul.f32 %v410, 1.442695
      %v412 = vpow.pop %v411
      %v413 = vsel %vm358, %v412, 0.0
      %414 = vadd.xlane.f32.xlu0 %v413
      %v415 = vpop.xlane.xlu0 %414
      %v416 = vrcp.pop %v415
      %v417 = vmul.f32 %v412, %v416
      %v418 = vpack.c.bf16 %v417, %v417
      %v420 = vsel %vm358, %v418, 0
      %vm422 = vcmask 1043456
      %v424 = vsel %vm422, %v357, 0
      %426 = vmatprep.subr.bf16.mxu0 0
      %427 = vmatpush1.bf16.msra.mxu0 0
      %428 = vmatprep.subr.bf16.mxu0 0
      %429 = vmatpush1.bf16.msra.mxu0 0
      %430 = vmatprep.subr.bf16.mxu0 0
      %431 = vmatpush1.bf16.msra.mxu0 0
      %432 = vmatprep.subr.bf16.mxu0 0
      %433 = vmatpush1.bf16.msra.mxu0 0
      %434 = vmatprep.subr.bf16.mxu0 0
      %435 = vmatpush1.bf16.msra.mxu0 0
      %436 = vmatprep.subr.bf16.mxu0 0
      %437 = vmatpush1.bf16.msra.mxu0 0
      %438 = vmatprep.subr.bf16.mxu0 0
      %439 = vmatpush1.bf16.msra.mxu0 0
      %440 = vmatprep.subr.bf16.mxu0 0
      %441 = vmatpush1.bf16.msra.mxu0 %v424
      %442 = vmatprep.subr.bf16.mxu0 0
      %443 = vmatpush2.bf16.msra.mxu0 0
      %444 = vmatprep.subr.bf16.mxu0 0
      %445 = vmatpush2.bf16.msra.mxu0 0
      %446 = vmatprep.subr.bf16.mxu0 0
      %447 = vmatpush2.bf16.msra.mxu0 0
      %448 = vmatprep.subr.bf16.mxu0 0
      %449 = vmatpush2.bf16.msra.mxu0 0
      %450 = vmatprep.subr.bf16.mxu0 0
      %451 = vmatpush2.bf16.msra.mxu0 0
      %452 = vmatprep.subr.bf16.mxu0 0
      %453 = vmatpush2.bf16.msra.mxu0 0
      %454 = vmatprep.subr.bf16.mxu0 0
      %455 = vmatpush2.bf16.msra.mxu0 0
      %456 = vmatprep.subr.bf16.mxu0 0
      %457 = vmatpush2.bf16.msra.mxu0 0
      %458 = vmatprep.mubr.bf16.mxu0 0
      %459 = vmatmul.mubr.bf16.gmra.mxu0 %v420
      %v460 = vpop.f32.mrf.mxu0
      %v461 = vadd.f32 0.0, %v460
      %v462 = vpop.f32.mrf.mxu0
      %v463 = vpop.f32.mrf.mxu0
      %v464 = vpop.f32.mrf.mxu0
      %465 = vdwg.mxu0
      %v466 = vpack.c.bf16 %v461, %v461
      %vm467 = vcmask 60416
      %468 = vst.msk [vmem:[#allocation5] sm:$0xf] %vm467, %v466
      %v470 = vunpack.c.l.b16 %v351
      %v471 = vpack.c.b16 %v470, %v470
      %472 = vrot.lane.b32.xlu0 %v471, 120
      %v473 = vpop.permute.xlu0 %472
      %v475 = vunpack.c.l.b16 %v354
      %v476 = vpack.c.b16 %v475, %v475
      %477 = vrot.lane.b32.xlu0 %v476, 120
      %v478 = vpop.permute.xlu0 %477
      %v480 = vsel %vm358, %v473, 0
      %v483 = vsel %vm358, %v478, 0
      %485 = vmatprep.subr.bf16.mxu0 0
      %486 = vmatpush1.bf16.xpose.msra.mxu0 0
      %487 = vmatprep.subr.bf16.mxu0 0
      %488 = vmatpush1.bf16.xpose.msra.mxu0 0
      %489 = vmatprep.subr.bf16.mxu0 0
      %490 = vmatpush1.bf16.xpose.msra.mxu0 0
      %491 = vmatprep.subr.bf16.mxu0 0
      %492 = vmatpush1.bf16.xpose.msra.mxu0 0
      %493 = vmatprep.subr.bf16.mxu0 0
      %494 = vmatpush1.bf16.xpose.msra.mxu0 0
      %495 = vmatprep.subr.bf16.mxu0 0
      %496 = vmatpush1.bf16.xpose.msra.mxu0 0
      %497 = vmatprep.subr.bf16.mxu0 0
      %498 = vmatpush1.bf16.xpose.msra.mxu0 0
      %499 = vmatprep.subr.bf16.mxu0 0
      %500 = vmatpush1.bf16.xpose.msra.mxu0 %v483
      %501 = vmatprep.subr.bf16.mxu0 0
      %502 = vmatpush2.bf16.xpose.msra.mxu0 0
      %503 = vmatprep.subr.bf16.mxu0 0
      %504 = vmatpush2.bf16.xpose.msra.mxu0 0
      %505 = vmatprep.subr.bf16.mxu0 0
      %506 = vmatpush2.bf16.xpose.msra.mxu0 0
      %507 = vmatprep.subr.bf16.mxu0 0
      %508 = vmatpush2.bf16.xpose.msra.mxu0 0
      %509 = vmatprep.subr.bf16.mxu0 0
      %510 = vmatpush2.bf16.xpose.msra.mxu0 0
      %511 = vmatprep.subr.bf16.mxu0 0
      %512 = vmatpush2.bf16.xpose.msra.mxu0 0
      %513 = vmatprep.subr.bf16.mxu0 0
      %514 = vmatpush2.bf16.xpose.msra.mxu0 0
      %515 = vmatprep.subr.bf16.mxu0 0
      %516 = vmatpush2.bf16.xpose.msra.mxu0 0
      %517 = vmatprep.mubr.bf16.mxu0 0
      %518 = vmatmul.mubr.bf16.gmra.mxu0 %v480
      %v519 = vpop.f32.mrf.mxu0
      %v520 = vadd.f32 0.0, %v519
      %v521 = vpop.f32.mrf.mxu0
      %v522 = vpop.f32.mrf.mxu0
      %v523 = vpop.f32.mrf.mxu0
      %524 = vdwg.mxu0
      %v525 = vmul.f32 %v520, 0.35355338
      %v526 = vadd.f32 %v525, %v161
      %v527 = vsel %vm358, %v526, -inf
      %528 = vmax.xlane.f32.xlu0 %v527
      %v529 = vpop.xlane.xlu0 %528
      %v530 = vsub.f32 %v526, %v529
      %v531 = vmul.f32 %v530, 1.442695
      %v532 = vpow.pop %v531
      %v533 = vsel %vm358, %v532, 0.0
      %534 = vadd.xlane.f32.xlu0 %v533
      %v535 = vpop.xlane.xlu0 %534
      %v536 = vrcp.pop %v535
      %v537 = vmul.f32 %v532, %v536
      %v538 = vpack.c.bf16 %v537, %v537
      %v540 = vunpack.c.l.b16 %v357
      %v541 = vpack.c.b16 %v540, %v540
      %542 = vrot.lane.b32.xlu0 %v541, 120
      %v543 = vpop.permute.xlu0 %542
      %v545 = vsel %vm358, %v538, 0
      %v548 = vsel %vm422, %v543, 0
      %550 = vmatprep.subr.bf16.mxu0 0
      %551 = vmatpush1.bf16.msra.mxu0 0
      %552 = vmatprep.subr.bf16.mxu0 0
      %553 = vmatpush1.bf16.msra.mxu0 0
      %554 = vmatprep.subr.bf16.mxu0 0
      %555 = vmatpush1.bf16.msra.mxu0 0
      %556 = vmatprep.subr.bf16.mxu0 0
      %557 = vmatpush1.bf16.msra.mxu0 0
      %558 = vmatprep.subr.bf16.mxu0 0
      %559 = vmatpush1.bf16.msra.mxu0 0
      %560 = vmatprep.subr.bf16.mxu0 0
      %561 = vmatpush1.bf16.msra.mxu0 0
      %562 = vmatprep.subr.bf16.mxu0 0
      %563 = vmatpush1.bf16.msra.mxu0 0
      %564 = vmatprep.subr.bf16.mxu0 0
      %565 = vmatpush1.bf16.msra.mxu0 %v548
      %566 = vmatprep.subr.bf16.mxu0 0
      %567 = vmatpush2.bf16.msra.mxu0 0
      %568 = vmatprep.subr.bf16.mxu0 0
      %569 = vmatpush2.bf16.msra.mxu0 0
      %570 = vmatprep.subr.bf16.mxu0 0
      %571 = vmatpush2.bf16.msra.mxu0 0
      %572 = vmatprep.subr.bf16.mxu0 0
      %573 = vmatpush2.bf16.msra.mxu0 0
      %574 = vmatprep.subr.bf16.mxu0 0
      %575 = vmatpush2.bf16.msra.mxu0 0
      %576 = vmatprep.subr.bf16.mxu0 0
      %577 = vmatpush2.bf16.msra.mxu0 0
      %578 = vmatprep.subr.bf16.mxu0 0
      %579 = vmatpush2.bf16.msra.mxu0 0
      %580 = vmatprep.subr.bf16.mxu0 0
      %581 = vmatpush2.bf16.msra.mxu0 0
      %582 = vmatprep.mubr.bf16.mxu0 0
      %583 = vmatmul.mubr.bf16.gmra.mxu0 %v545
      %v584 = vpop.f32.mrf.mxu0
      %v585 = vadd.f32 0.0, %v584
      %v586 = vpop.f32.mrf.mxu0
      %v587 = vpop.f32.mrf.mxu0
      %v588 = vpop.f32.mrf.mxu0
      %589 = vdwg.mxu0
      %v590 = vpack.c.bf16 %v585, %v585
      %v592 = vunpack.c.l.b16 %v590
      %v593 = vpack.c.b16 %v592, %v592
      %594 = vrot.lane.b32.xlu0 %v593, 8
      %v595 = vpop.permute.xlu0 %594
      %vm597 = vcmask 126016
      %598 = vst.msk [vmem:[#allocation5] sm:$0xf] %vm597, %v595
      %599 = vrot.lane.b32.xlu0 %v471, 112
      %v600 = vpop.permute.xlu0 %599
      %601 = vrot.lane.b32.xlu0 %v476, 112
      %v602 = vpop.permute.xlu0 %601
      %v604 = vsel %vm358, %v600, 0
      %v607 = vsel %vm358, %v602, 0
      %609 = vmatprep.subr.bf16.mxu0 0
      %610 = vmatpush1.bf16.xpose.msra.mxu0 0
      %611 = vmatprep.subr.bf16.mxu0 0
      %612 = vmatpush1.bf16.xpose.msra.mxu0 0
      %613 = vmatprep.subr.bf16.mxu0 0
      %614 = vmatpush1.bf16.xpose.msra.mxu0 0
      %615 = vmatprep.subr.bf16.mxu0 0
      %616 = vmatpush1.bf16.xpose.msra.mxu0 0
      %617 = vmatprep.subr.bf16.mxu0 0
      %618 = vmatpush1.bf16.xpose.msra.mxu0 0
      %619 = vmatprep.subr.bf16.mxu0 0
      %620 = vmatpush1.bf16.xpose.msra.mxu0 0
      %621 = vmatprep.subr.bf16.mxu0 0
      %622 = vmatpush1.bf16.xpose.msra.mxu0 0
      %623 = vmatprep.subr.bf16.mxu0 0
      %624 = vmatpush1.bf16.xpose.msra.mxu0 %v607
      %625 = vmatprep.subr.bf16.mxu0 0
      %626 = vmatpush2.bf16.xpose.msra.mxu0 0
      %627 = vmatprep.subr.bf16.mxu0 0
      %628 = vmatpush2.bf16.xpose.msra.mxu0 0
      %629 = vmatprep.subr.bf16.mxu0 0
      %630 = vmatpush2.bf16.xpose.msra.mxu0 0
      %631 = vmatprep.subr.bf16.mxu0 0
      %632 = vmatpush2.bf16.xpose.msra.mxu0 0
      %633 = vmatprep.subr.bf16.mxu0 0
      %634 = vmatpush2.bf16.xpose.msra.mxu0 0
      %635 = vmatprep.subr.bf16.mxu0 0
      %636 = vmatpush2.bf16.xpose.msra.mxu0 0
      %637 = vmatprep.subr.bf16.mxu0 0
      %638 = vmatpush2.bf16.xpose.msra.mxu0 0
      %639 = vmatprep.subr.bf16.mxu0 0
      %640 = vmatpush2.bf16.xpose.msra.mxu0 0
      %641 = vmatprep.mubr.bf16.mxu0 0
      %642 = vmatmul.mubr.bf16.gmra.mxu0 %v604
      %v643 = vpop.f32.mrf.mxu0
      %v644 = vadd.f32 0.0, %v643
      %v645 = vpop.f32.mrf.mxu0
      %v646 = vpop.f32.mrf.mxu0
      %v647 = vpop.f32.mrf.mxu0
      %648 = vdwg.mxu0
      %v649 = vmul.f32 %v644, 0.35355338
      %v650 = vadd.f32 %v649, %v161
      %v651 = vsel %vm358, %v650, -inf
      %652 = vmax.xlane.f32.xlu0 %v651
      %v653 = vpop.xlane.xlu0 %652
      %v654 = vsub.f32 %v650, %v653
      %v655 = vmul.f32 %v654, 1.442695
      %v656 = vpow.pop %v655
      %v657 = vsel %vm358, %v656, 0.0
      %658 = vadd.xlane.f32.xlu0 %v657
      %v659 = vpop.xlane.xlu0 %658
      %v660 = vrcp.pop %v659
      %v661 = vmul.f32 %v656, %v660
      %v662 = vpack.c.bf16 %v661, %v661
      %663 = vrot.lane.b32.xlu0 %v541, 112
      %v664 = vpop.permute.xlu0 %663
      %v666 = vsel %vm358, %v662, 0
      %v669 = vsel %vm422, %v664, 0
      %671 = vmatprep.subr.bf16.mxu0 0
      %672 = vmatpush1.bf16.msra.mxu0 0
      %673 = vmatprep.subr.bf16.mxu0 0
      %674 = vmatpush1.bf16.msra.mxu0 0
      %675 = vmatprep.subr.bf16.mxu0 0
      %676 = vmatpush1.bf16.msra.mxu0 0
      %677 = vmatprep.subr.bf16.mxu0 0
      %678 = vmatpush1.bf16.msra.mxu0 0
      %679 = vmatprep.subr.bf16.mxu0 0
      %680 = vmatpush1.bf16.msra.mxu0 0
      %681 = vmatprep.subr.bf16.mxu0 0
      %682 = vmatpush1.bf16.msra.mxu0 0
      %683 = vmatprep.subr.bf16.mxu0 0
      %684 = vmatpush1.bf16.msra.mxu0 0
      %685 = vmatprep.subr.bf16.mxu0 0
      %686 = vmatpush1.bf16.msra.mxu0 %v669
      %687 = vmatprep.subr.bf16.mxu0 0
      %688 = vmatpush2.bf16.msra.mxu0 0
      %689 = vmatprep.subr.bf16.mxu0 0
      %690 = vmatpush2.bf16.msra.mxu0 0
      %691 = vmatprep.subr.bf16.mxu0 0
      %692 = vmatpush2.bf16.msra.mxu0 0
      %693 = vmatprep.subr.bf16.mxu0 0
      %694 = vmatpush2.bf16.msra.mxu0 0
      %695 = vmatprep.subr.bf16.mxu0 0
      %696 = vmatpush2.bf16.msra.mxu0 0
      %697 = vmatprep.subr.bf16.mxu0 0
      %698 = vmatpush2.bf16.msra.mxu0 0
      %699 = vmatprep.subr.bf16.mxu0 0
      %700 = vmatpush2.bf16.msra.mxu0 0
      %701 = vmatprep.subr.bf16.mxu0 0
      %702 = vmatpush2.bf16.msra.mxu0 0
      %703 = vmatprep.mubr.bf16.mxu0 0
      %704 = vmatmul.mubr.bf16.gmra.mxu0 %v666
      %v705 = vpop.f32.mrf.mxu0
      %v706 = vadd.f32 0.0, %v705
      %v707 = vpop.f32.mrf.mxu0
      %v708 = vpop.f32.mrf.mxu0
      %v709 = vpop.f32.mrf.mxu0
      %710 = vdwg.mxu0
      %v711 = vpack.c.bf16 %v706, %v706
      %v713 = vunpack.c.l.b16 %v711
      %v714 = vpack.c.b16 %v713, %v713
      %715 = vrot.lane.b32.xlu0 %v714, 16
      %v716 = vpop.permute.xlu0 %715
      %vm718 = vcmask 191616
      %719 = vst.msk [vmem:[#allocation5] sm:$0xf] %vm718, %v716
      %720 = vrot.lane.b32.xlu0 %v471, 104
      %v721 = vpop.permute.xlu0 %720
      %722 = vrot.lane.b32.xlu0 %v476, 104
      %v723 = vpop.permute.xlu0 %722
      %v725 = vsel %vm358, %v721, 0
      %v728 = vsel %vm358, %v723, 0
      %730 = vmatprep.subr.bf16.mxu0 0
      %731 = vmatpush1.bf16.xpose.msra.mxu0 0
      %732 = vmatprep.subr.bf16.mxu0 0
      %733 = vmatpush1.bf16.xpose.msra.mxu0 0
      %734 = vmatprep.subr.bf16.mxu0 0
      %735 = vmatpush1.bf16.xpose.msra.mxu0 0
      %736 = vmatprep.subr.bf16.mxu0 0
      %737 = vmatpush1.bf16.xpose.msra.mxu0 0
      %738 = vmatprep.subr.bf16.mxu0 0
      %739 = vmatpush1.bf16.xpose.msra.mxu0 0
      %740 = vmatprep.subr.bf16.mxu0 0
      %741 = vmatpush1.bf16.xpose.msra.mxu0 0
      %742 = vmatprep.subr.bf16.mxu0 0
      %743 = vmatpush1.bf16.xpose.msra.mxu0 0
      %744 = vmatprep.subr.bf16.mxu0 0
      %745 = vmatpush1.bf16.xpose.msra.mxu0 %v728
      %746 = vmatprep.subr.bf16.mxu0 0
      %747 = vmatpush2.bf16.xpose.msra.mxu0 0
      %748 = vmatprep.subr.bf16.mxu0 0
      %749 = vmatpush2.bf16.xpose.msra.mxu0 0
      %750 = vmatprep.subr.bf16.mxu0 0
      %751 = vmatpush2.bf16.xpose.msra.mxu0 0
      %752 = vmatprep.subr.bf16.mxu0 0
      %753 = vmatpush2.bf16.xpose.msra.mxu0 0
      %754 = vmatprep.subr.bf16.mxu0 0
      %755 = vmatpush2.bf16.xpose.msra.mxu0 0
      %756 = vmatprep.subr.bf16.mxu0 0
      %757 = vmatpush2.bf16.xpose.msra.mxu0 0
      %758 = vmatprep.subr.bf16.mxu0 0
      %759 = vmatpush2.bf16.xpose.msra.mxu0 0
      %760 = vmatprep.subr.bf16.mxu0 0
      %761 = vmatpush2.bf16.xpose.msra.mxu0 0
      %762 = vmatprep.mubr.bf16.mxu0 0
      %763 = vmatmul.mubr.bf16.gmra.mxu0 %v725
      %v764 = vpop.f32.mrf.mxu0
      %v765 = vadd.f32 0.0, %v764
      %v766 = vpop.f32.mrf.mxu0
      %v767 = vpop.f32.mrf.mxu0
      %v768 = vpop.f32.mrf.mxu0
      %769 = vdwg.mxu0
      %v770 = vmul.f32 %v765, 0.35355338
      %v771 = vadd.f32 %v770, %v161
      %v772 = vsel %vm358, %v771, -inf
      %773 = vmax.xlane.f32.xlu0 %v772
      %v774 = vpop.xlane.xlu0 %773
      %v775 = vsub.f32 %v771, %v774
      %v776 = vmul.f32 %v775, 1.442695
      %v777 = vpow.pop %v776
      %v778 = vsel %vm358, %v777, 0.0
      %779 = vadd.xlane.f32.xlu0 %v778
      %v780 = vpop.xlane.xlu0 %779
      %v781 = vrcp.pop %v780
      %v782 = vmul.f32 %v777, %v781
      %v783 = vpack.c.bf16 %v782, %v782
      %784 = vrot.lane.b32.xlu0 %v541, 104
      %v785 = vpop.permute.xlu0 %784
      %v787 = vsel %vm358, %v783, 0
      %v790 = vsel %vm422, %v785, 0
      %792 = vmatprep.subr.bf16.mxu0 0
      %793 = vmatpush1.bf16.msra.mxu0 0
      %794 = vmatprep.subr.bf16.mxu0 0
      %795 = vmatpush1.bf16.msra.mxu0 0
      %796 = vmatprep.subr.bf16.mxu0 0
      %797 = vmatpush1.bf16.msra.mxu0 0
      %798 = vmatprep.subr.bf16.mxu0 0
      %799 = vmatpush1.bf16.msra.mxu0 0
      %800 = vmatprep.subr.bf16.mxu0 0
      %801 = vmatpush1.bf16.msra.mxu0 0
      %802 = vmatprep.subr.bf16.mxu0 0
      %803 = vmatpush1.bf16.msra.mxu0 0
      %804 = vmatprep.subr.bf16.mxu0 0
      %805 = vmatpush1.bf16.msra.mxu0 0
      %806 = vmatprep.subr.bf16.mxu0 0
      %807 = vmatpush1.bf16.msra.mxu0 %v790
      %808 = vmatprep.subr.bf16.mxu0 0
      %809 = vmatpush2.bf16.msra.mxu0 0
      %810 = vmatprep.subr.bf16.mxu0 0
      %811 = vmatpush2.bf16.msra.mxu0 0
      %812 = vmatprep.subr.bf16.mxu0 0
      %813 = vmatpush2.bf16.msra.mxu0 0
      %814 = vmatprep.subr.bf16.mxu0 0
      %815 = vmatpush2.bf16.msra.mxu0 0
      %816 = vmatprep.subr.bf16.mxu0 0
      %817 = vmatpush2.bf16.msra.mxu0 0
      %818 = vmatprep.subr.bf16.mxu0 0
      %819 = vmatpush2.bf16.msra.mxu0 0
      %820 = vmatprep.subr.bf16.mxu0 0
      %821 = vmatpush2.bf16.msra.mxu0 0
      %822 = vmatprep.subr.bf16.mxu0 0
      %823 = vmatpush2.bf16.msra.mxu0 0
      %824 = vmatprep.mubr.bf16.mxu0 0
      %825 = vmatmul.mubr.bf16.gmra.mxu0 %v787
      %v826 = vpop.f32.mrf.mxu0
      %v827 = vadd.f32 0.0, %v826
      %v828 = vpop.f32.mrf.mxu0
      %v829 = vpop.f32.mrf.mxu0
      %v830 = vpop.f32.mrf.mxu0
      %831 = vdwg.mxu0
      %v832 = vpack.c.bf16 %v827, %v827
      %v834 = vunpack.c.l.b16 %v832
      %v835 = vpack.c.b16 %v834, %v834
      %836 = vrot.lane.b32.xlu0 %v835, 24
      %v837 = vpop.permute.xlu0 %836
      %vm839 = vcmask 257216
      %840 = vst.msk [vmem:[#allocation5] sm:$0xf] %vm839, %v837
      %v841 = vld [vmem:[#allocation5] sm:$0xf]
      %v842 = vld [vmem:[#allocation16] sm:$0xf]
      %v843 = vld [vmem:[#allocation16 + $0x4] sm:$0xf]
      %v844 = vld [vmem:[#allocation16 + $0x8] sm:$0xf]
      %v845 = vld [vmem:[#allocation16 + $0xc] sm:$0xf]
      %v850 = vunpack.c.l.b16 %v842
      %v851 = vunpack.c.l.b16 %v843
      %v852 = vunpack.c.l.b16 %v844
      %v853 = vunpack.c.l.b16 %v845
      %v854 = vpack.c.b16 %v851, %v850
      %v855 = vpack.c.b16 %v853, %v852
      %v859 = vsel %vm194, %v841, 0
      %861 = vmatprep.subr.bf16.mxu0 0
      %862 = vmatpush1.bf16.msra.mxu0 0
      %863 = vmatprep.subr.bf16.mxu0 0
      %864 = vmatpush1.bf16.msra.mxu0 0
      %865 = vmatprep.subr.bf16.mxu0 0
      %866 = vmatpush1.bf16.msra.mxu0 0
      %867 = vmatprep.subr.bf16.mxu0 0
      %868 = vmatpush1.bf16.msra.mxu0 0
      %869 = vmatprep.subr.bf16.mxu0 0
      %870 = vmatpush1.bf16.msra.mxu0 0
      %871 = vmatprep.subr.bf16.mxu0 0
      %872 = vmatpush1.bf16.msra.mxu0 0
      %873 = vmatprep.subr.bf16.mxu0 0
      %874 = vmatpush1.bf16.msra.mxu0 %v855
      %875 = vmatprep.subr.bf16.mxu0 0
      %876 = vmatpush1.bf16.msra.mxu0 %v854
      %877 = vmatprep.subr.bf16.mxu0 0
      %878 = vmatpush2.bf16.msra.mxu0 0
      %879 = vmatprep.subr.bf16.mxu0 0
      %880 = vmatpush2.bf16.msra.mxu0 0
      %881 = vmatprep.subr.bf16.mxu0 0
      %882 = vmatpush2.bf16.msra.mxu0 0
      %883 = vmatprep.subr.bf16.mxu0 0
      %884 = vmatpush2.bf16.msra.mxu0 0
      %885 = vmatprep.subr.bf16.mxu0 0
      %886 = vmatpush2.bf16.msra.mxu0 0
      %887 = vmatprep.subr.bf16.mxu0 0
      %888 = vmatpush2.bf16.msra.mxu0 0
      %889 = vmatprep.subr.bf16.mxu0 0
      %890 = vmatpush2.bf16.msra.mxu0 0
      %891 = vmatprep.subr.bf16.mxu0 0
      %892 = vmatpush2.bf16.msra.mxu0 0
      %893 = vmatprep.mubr.bf16.mxu0 0
      %894 = vmatmul.mubr.bf16.gmra.mxu0 %v859
      %v895 = vpop.f32.mrf.mxu0
      %v896 = vadd.f32 0.0, %v895
      %v897 = vpop.f32.mrf.mxu0
      %v898 = vpop.f32.mrf.mxu0
      %v899 = vpop.f32.mrf.mxu0
      %900 = vdwg.mxu0
      %s901 = scalar_lea.vmem [#allocation6], %s346
      %902 = vst.msk [vmem:[%s901] sm:$0xff] %vm194, %v896
    $region106: #{tpu_custom_call.1} parent=1 // loop_footer
      %s345 = sadd.s32 1, %s341
    $region107: #{tpu_custom_call.1} parent=1 // loop_footer_branch
      %340 = sbr.rel target = $region103
    $region108: #{tpu_custom_call.1} parent=1 // loop_exit
      _
    %v903 = vld [vmem:[#allocation6] sm:$0xff]
    %v904 = vld [vmem:[#allocation6 + $0x8] sm:$0xff]
    %v905 = vld [vmem:[%s7] sm:$0x1]
    %v907 = vlaneseq
    %v908 = vshrl.u32 %v907, 7
    %v909 = vsub.s32 0, %v908
    %v910 = vrot.slane %v905, %v909
    %v912 = vadd.f32 %v903, %v910
    %v913 = vadd.f32 %v904, %v910
    %v914 = vunpack.c.l.bf16 %v162
    %v915 = vunpack.c.l.bf16 %v163
    %v916 = vadd.f32 %v912, %v914
    %v917 = vadd.f32 %v913, %v915
    %v918 = vld [vmem:[%s8] sm:$0x1]
    %v919 = vld [vmem:[#allocation17] sm:$0x1]
    %v920 = vsel %vm194, %v916, 0.0
    %921 = vadd.xlane.f32.xlu0 %v920
    %v922 = vpop.xlane.xlu0 %921
    %v923 = vsel %vm194, %v917, 0.0
    %924 = vadd.xlane.f32.xlu0 %v923
    %v925 = vpop.xlane.xlu0 %924
    %v926 = vrcp.pop 32.0
    %v927 = vmul.f32 %v922, %v926
    %v928 = vmul.f32 %v925, %v926
    %v929 = vsub.f32 %v916, %v927
    %v930 = vsub.f32 %v917, %v928
    %v931 = vmul.f32 %v929, %v929
    %v932 = vmul.f32 %v930, %v930
    %v933 = vsel %vm194, %v931, 0.0
    %934 = vadd.xlane.f32.xlu0 %v933
    %v935 = vpop.xlane.xlu0 %934
    %v936 = vsel %vm194, %v932, 0.0
    %937 = vadd.xlane.f32.xlu0 %v936
    %v938 = vpop.xlane.xlu0 %937
    %v939 = vmul.f32 %v935, %v926
    %v940 = vmul.f32 %v938, %v926
    %v941 = vadd.f32 %v939, 1e-05
    %v942 = vadd.f32 %v940, 1e-05
    %v943 = vrsqrt.pop %v941
    %v944 = vrsqrt.pop %v942
    %v945 = vmul.f32 %v929, %v943
    %v946 = vmul.f32 %v930, %v944
    %v948 = vlaneseq
    %v949 = vshrl.u32 %v948, 7
    %v950 = vsub.s32 0, %v949
    %v951 = vrot.slane %v918, %v950
    %v953 = vmul.f32 %v945, %v951
    %v954 = vmul.f32 %v946, %v951
    %v956 = vlaneseq
    %v957 = vshrl.u32 %v956, 7
    %v958 = vsub.s32 0, %v957
    %v959 = vrot.slane %v919, %v958
    %v961 = vadd.f32 %v953, %v959
    %v962 = vadd.f32 %v954, %v959
    %v963 = vpack.c.bf16 %v962, %v961
    %v964 = vld [vmem:[%s10] sm:$0xf]
    %v965 = vld [vmem:[%s10 + $0x4] sm:$0xf]
    %v966 = vld [vmem:[%s10 + $0x8] sm:$0xf]
    %v967 = vld [vmem:[%s10 + $0xc] sm:$0xf]
    %v968 = vld [vmem:[%s11] sm:$0x1]
    %v970 = vlaneseq
    %v971 = vshrl.u32 %v970, 7
    %v972 = vsub.s32 0, %v971
    %v973 = vrot.slane %v968, %v972
    %v979 = vunpack.c.l.b16 %v964
    %v980 = vunpack.c.l.b16 %v965
    %v981 = vunpack.c.l.b16 %v966
    %v982 = vunpack.c.l.b16 %v967
    %v983 = vpack.c.b16 %v980, %v979
    %v984 = vpack.c.b16 %v982, %v981
    %v988 = vsel %vm194, %v963, 0
    %990 = vmatprep.subr.bf16.mxu0 0
    %991 = vmatpush1.bf16.msra.mxu0 0
    %992 = vmatprep.subr.bf16.mxu0 0
    %993 = vmatpush1.bf16.msra.mxu0 0
    %994 = vmatprep.subr.bf16.mxu0 0
    %995 = vmatpush1.bf16.msra.mxu0 0
    %996 = vmatprep.subr.bf16.mxu0 0
    %997 = vmatpush1.bf16.msra.mxu0 0
    %998 = vmatprep.subr.bf16.mxu0 0
    %999 = vmatpush1.bf16.msra.mxu0 0
    %1000 = vmatprep.subr.bf16.mxu0 0
    %1001 = vmatpush1.bf16.msra.mxu0 0
    %1002 = vmatprep.subr.bf16.mxu0 0
    %1003 = vmatpush1.bf16.msra.mxu0 %v984
    %1004 = vmatprep.subr.bf16.mxu0 0
    %1005 = vmatpush1.bf16.msra.mxu0 %v983
    %1006 = vmatprep.subr.bf16.mxu0 0
    %1007 = vmatpush2.bf16.msra.mxu0 0
    %1008 = vmatprep.subr.bf16.mxu0 0
    %1009 = vmatpush2.bf16.msra.mxu0 0
    %1010 = vmatprep.subr.bf16.mxu0 0
    %1011 = vmatpush2.bf16.msra.mxu0 0
    %1012 = vmatprep.subr.bf16.mxu0 0
    %1013 = vmatpush2.bf16.msra.mxu0 0
    %1014 = vmatprep.subr.bf16.mxu0 0
    %1015 = vmatpush2.bf16.msra.mxu0 0
    %1016 = vmatprep.subr.bf16.mxu0 0
    %1017 = vmatpush2.bf16.msra.mxu0 0
    %1018 = vmatprep.subr.bf16.mxu0 0
    %1019 = vmatpush2.bf16.msra.mxu0 0
    %1020 = vmatprep.subr.bf16.mxu0 0
    %1021 = vmatpush2.bf16.msra.mxu0 0
    %1022 = vmatprep.mubr.bf16.mxu0 0
    %1023 = vmatmul.mubr.bf16.gmra.mxu0 %v988
    %v1024 = vpop.f32.mrf.mxu0
    %v1025 = vadd.f32 %v973, %v1024
    %v1026 = vpop.f32.mrf.mxu0
    %v1027 = vpop.f32.mrf.mxu0
    %v1028 = vadd.f32 %v973, %v1027
    %v1029 = vpop.f32.mrf.mxu0
    %1030 = vdwg.mxu0
    %v1031 = vmax.f32 %v1025, 0.0
    %v1032 = vmax.f32 %v1028, 0.0
    %v1033 = vpack.c.bf16 %v1032, %v1031
    %v1034 = vld [vmem:[#allocation19] sm:$0xf]
    %v1035 = vld [vmem:[#allocation19 + $0x4] sm:$0xf]
    %v1036 = vld [vmem:[#allocation19 + $0x8] sm:$0xf]
    %v1037 = vld [vmem:[#allocation19 + $0xc] sm:$0xf]
    %v1038 = vld [vmem:[%s13] sm:$0x1]
    %v1040 = vlaneseq
    %v1041 = vshrl.u32 %v1040, 7
    %v1042 = vsub.s32 0, %v1041
    %v1043 = vrot.slane %v1038, %v1042
    %v1049 = vunpack.c.l.b16 %v1034
    %v1050 = vunpack.c.l.b16 %v1035
    %v1051 = vunpack.c.l.b16 %v1036
    %v1052 = vunpack.c.l.b16 %v1037
    %v1053 = vpack.c.b16 %v1050, %v1049
    %v1054 = vpack.c.b16 %v1052, %v1051
    %v1058 = vsel %vm194, %v1033, 0
    %1060 = vmatprep.subr.bf16.mxu0 0
    %1061 = vmatpush1.bf16.msra.mxu0 0
    %1062 = vmatprep.subr.bf16.mxu0 0
    %1063 = vmatpush1.bf16.msra.mxu0 0
    %1064 = vmatprep.subr.bf16.mxu0 0
    %1065 = vmatpush1.bf16.msra.mxu0 0
    %1066 = vmatprep.subr.bf16.mxu0 0
    %1067 = vmatpush1.bf16.msra.mxu0 0
    %1068 = vmatprep.subr.bf16.mxu0 0
    %1069 = vmatpush1.bf16.msra.mxu0 0
    %1070 = vmatprep.subr.bf16.mxu0 0
    %1071 = vmatpush1.bf16.msra.mxu0 0
    %1072 = vmatprep.subr.bf16.mxu0 0
    %1073 = vmatpush1.bf16.msra.mxu0 %v1054
    %1074 = vmatprep.subr.bf16.mxu0 0
    %1075 = vmatpush1.bf16.msra.mxu0 %v1053
    %1076 = vmatprep.subr.bf16.mxu0 0
    %1077 = vmatpush2.bf16.msra.mxu0 0
    %1078 = vmatprep.subr.bf16.mxu0 0
    %1079 = vmatpush2.bf16.msra.mxu0 0
    %1080 = vmatprep.subr.bf16.mxu0 0
    %1081 = vmatpush2.bf16.msra.mxu0 0
    %1082 = vmatprep.subr.bf16.mxu0 0
    %1083 = vmatpush2.bf16.msra.mxu0 0
    %1084 = vmatprep.subr.bf16.mxu0 0
    %1085 = vmatpush2.bf16.msra.mxu0 0
    %1086 = vmatprep.subr.bf16.mxu0 0
    %1087 = vmatpush2.bf16.msra.mxu0 0
    %1088 = vmatprep.subr.bf16.mxu0 0
    %1089 = vmatpush2.bf16.msra.mxu0 0
    %1090 = vmatprep.subr.bf16.mxu0 0
    %1091 = vmatpush2.bf16.msra.mxu0 0
    %1092 = vmatprep.mubr.bf16.mxu0 0
    %1093 = vmatmul.mubr.bf16.gmra.mxu0 %v1058
    %v1094 = vpop.f32.mrf.mxu0
    %v1095 = vadd.f32 %v1043, %v1094
    %v1096 = vpop.f32.mrf.mxu0
    %v1097 = vpop.f32.mrf.mxu0
    %v1098 = vadd.f32 %v1043, %v1097
    %v1099 = vpop.f32.mrf.mxu0
    %1100 = vdwg.mxu0
    %v1101 = vadd.f32 %v1095, %v961
    %v1102 = vadd.f32 %v1098, %v962
    %v1103 = vld [vmem:[%s14] sm:$0x1]
    %v1104 = vld [vmem:[%s15] sm:$0x1]
    %v1105 = vsel %vm194, %v1101, 0.0
    %1106 = vadd.xlane.f32.xlu0 %v1105
    %v1107 = vpop.xlane.xlu0 %1106
    %v1108 = vsel %vm194, %v1102, 0.0
    %1109 = vadd.xlane.f32.xlu0 %v1108
    %v1110 = vpop.xlane.xlu0 %1109
    %v1111 = vmul.f32 %v1107, %v926
    %v1112 = vmul.f32 %v1110, %v926
    %v1113 = vsub.f32 %v1101, %v1111
    %v1114 = vsub.f32 %v1102, %v1112
    %v1115 = vmul.f32 %v1113, %v1113
    %v1116 = vmul.f32 %v1114, %v1114
    %v1117 = vsel %vm194, %v1115, 0.0
    %1118 = vadd.xlane.f32.xlu0 %v1117
    %v1119 = vpop.xlane.xlu0 %1118
    %v1120 = vsel %vm194, %v1116, 0.0
    %1121 = vadd.xlane.f32.xlu0 %v1120
    %v1122 = vpop.xlane.xlu0 %1121
    %v1123 = vmul.f32 %v1119, %v926
    %v1124 = vmul.f32 %v1122, %v926
    %v1125 = vadd.f32 %v1123, 1e-05
    %v1126 = vadd.f32 %v1124, 1e-05
    %v1127 = vrsqrt.pop %v1125
    %v1128 = vrsqrt.pop %v1126
    %v1129 = vmul.f32 %v1113, %v1127
    %v1130 = vmul.f32 %v1114, %v1128
    %v1132 = vlaneseq
    %v1133 = vshrl.u32 %v1132, 7
    %v1134 = vsub.s32 0, %v1133
    %v1135 = vrot.slane %v1103, %v1134
    %v1137 = vmul.f32 %v1129, %v1135
    %v1138 = vmul.f32 %v1130, %v1135
    %v1140 = vlaneseq
    %v1141 = vshrl.u32 %v1140, 7
    %v1142 = vsub.s32 0, %v1141
    %v1143 = vrot.slane %v1104, %v1142
    %v1145 = vadd.f32 %v1137, %v1143
    %v1146 = vadd.f32 %v1138, %v1143
    %v1147 = vld [vmem:[%s16] sm:$0x1]
    %v1149 = vsel %vm194, %v1147, 0
    %v1152 = vsel %vm194, %v1145, 0
    %v1155 = vsel %vm194, %v1146, 0
    %1157 = vmatprep.subr.mxu0 0.0
    %1158 = vmatpush1.xpose.msra.mxu0 0.0
    %1159 = vmatprep.subr.mxu0 0.0
    %1160 = vmatpush1.xpose.msra.mxu0 0.0
    %1161 = vmatprep.subr.mxu0 0.0
    %1162 = vmatpush1.xpose.msra.mxu0 0.0
    %1163 = vmatprep.subr.mxu0 0.0
    %1164 = vmatpush1.xpose.msra.mxu0 0.0
    %1165 = vmatprep.subr.mxu0 0.0
    %1166 = vmatpush1.xpose.msra.mxu0 0.0
    %1167 = vmatprep.subr.mxu0 0.0
    %1168 = vmatpush1.xpose.msra.mxu0 0.0
    %1169 = vmatprep.subr.mxu0 0.0
    %1170 = vmatpush1.xpose.msra.mxu0 0.0
    %1171 = vmatprep.subr.mxu0 0.0
    %1172 = vmatpush1.xpose.msra.mxu0 0.0
    %1173 = vmatprep.subr.mxu0 0.0
    %1174 = vmatpush1.xpose.msra.mxu0 0.0
    %1175 = vmatprep.subr.mxu0 0.0
    %1176 = vmatpush1.xpose.msra.mxu0 0.0
    %1177 = vmatprep.subr.mxu0 0.0
    %1178 = vmatpush1.xpose.msra.mxu0 0.0
    %1179 = vmatprep.subr.mxu0 0.0
    %1180 = vmatpush1.xpose.msra.mxu0 0.0
    %1181 = vmatprep.subr.mxu0 0.0
    %1182 = vmatpush1.xpose.msra.mxu0 0.0
    %1183 = vmatprep.subr.mxu0 0.0
    %1184 = vmatpush1.xpose.msra.mxu0 0.0
    %1185 = vmatprep.subr.mxu0 0.0
    %1186 = vmatpush1.xpose.msra.mxu0 %v1155
    %1187 = vmatprep.subr.mxu0 0.0
    %1188 = vmatpush1.xpose.msra.mxu0 %v1152
    %1189 = vmatprep.subr.mxu0 0.0
    %1190 = vmatpush2.xpose.msra.mxu0 0.0
    %1191 = vmatprep.subr.mxu0 0.0
    %1192 = vmatpush2.xpose.msra.mxu0 0.0
    %1193 = vmatprep.subr.mxu0 0.0
    %1194 = vmatpush2.xpose.msra.mxu0 0.0
    %1195 = vmatprep.subr.mxu0 0.0
    %1196 = vmatpush2.xpose.msra.mxu0 0.0
    %1197 = vmatprep.subr.mxu0 0.0
    %1198 = vmatpush2.xpose.msra.mxu0 0.0
    %1199 = vmatprep.subr.mxu0 0.0
    %1200 = vmatpush2.xpose.msra.mxu0 0.0
    %1201 = vmatprep.subr.mxu0 0.0
    %1202 = vmatpush2.xpose.msra.mxu0 0.0
    %1203 = vmatprep.subr.mxu0 0.0
    %1204 = vmatpush2.xpose.msra.mxu0 0.0
    %1205 = vmatprep.subr.mxu0 0.0
    %1206 = vmatpush2.xpose.msra.mxu0 0.0
    %1207 = vmatprep.subr.mxu0 0.0
    %1208 = vmatpush2.xpose.msra.mxu0 0.0
    %1209 = vmatprep.subr.mxu0 0.0
    %1210 = vmatpush2.xpose.msra.mxu0 0.0
    %1211 = vmatprep.subr.mxu0 0.0
    %1212 = vmatpush2.xpose.msra.mxu0 0.0
    %1213 = vmatprep.subr.mxu0 0.0
    %1214 = vmatpush2.xpose.msra.mxu0 0.0
    %1215 = vmatprep.subr.mxu0 0.0
    %1216 = vmatpush2.xpose.msra.mxu0 0.0
    %1217 = vmatprep.subr.mxu0 0.0
    %1218 = vmatpush2.xpose.msra.mxu0 0.0
    %1219 = vmatprep.subr.mxu0 0.0
    %1220 = vmatpush2.xpose.msra.mxu0 0.0
    %1221 = vmatprep.mubr.f32.mxu0 0.0
    %1222 = vmatmul.mubr.f32.gmra.mxu0 %v1149
    %v1223 = vpop.f32.mrf.mxu0
    %v1224 = vadd.f32 0.0, %v1223
    %v1225 = vpop.f32.mrf.mxu0
    %1226 = vdwg.mxu0
    %v1227 = vld [vmem:[#allocation7] sm:$0x1]
    %s1228 = vtos %v1227
    %v1229 = vstv %s1228
    %v1230 = vadd.f32 %v1224, %v1229
    %vm1231 = vcmask 57344
    %1232 = vst.msk [vmem:[#allocation20] sm:$0x1] %vm1231, %v1230
    %1234 = vrot.lane.b32.xlu0 %v1230, 120
    %v1235 = vpop.permute.xlu0 %1234
    %1237 = vst.msk [vmem:[#allocation20 + $0x1] sm:$0x1] %vm1231, %v1235
    // Predicated region
    $region109: #{tpu_custom_call.1} parent=1 // pred_check
      _
    $region110: #{tpu_custom_call.1} parent=1 // pred_check_branch
      %1239 = sbr.rel (0) target = $region112
    $region111: #{tpu_custom_call.1} parent=1 // pred_region
      %s1241 = ssub.s32 32, 32
      %1242 = vsyncadd [#allocation10], %s1241
      %s1244 = sshll.u32 [#allocation20], 4
      %s1245 = int_to_ptr.vmem [resolvable:$true] %s1244
      %1247 = dma.vmem_to_hbm [thread:$0]  %s1245, 32, %s18, [#allocation10]
    $region112: #{tpu_custom_call.1} parent=1 // pred_fallthru
      _
    // Predicated region
    $region113: #{tpu_custom_call.1} parent=1 // pred_check
      _
    $region114: #{tpu_custom_call.1} parent=1 // pred_check_branch
      %1249 = sbr.rel (0) target = $region116
    $region115: #{tpu_custom_call.1} parent=1 // pred_region
      %1250 = dma.done [#allocation10], 32
    $region116: #{tpu_custom_call.1} parent=1 // pred_fallthru
      _
    %1251 = vsyncpa [#allocation9], 1
    %1252 = vsyncpa [#allocation12], 1
    %1253 = vsyncpa [#allocation15], 1
    %1254 = vsyncpa [#allocation18], 1
    %1255 = vsyncpa [#allocation10], 1

</llo_original>
